<compile_context>
chip_gen: v6e
topology: v6e:2x2x1
jax: 0.10.0
libtpu: 0.0.40
codegen_flags: <defaults>
</compile_context>

<pallas_src>
import functools
import math

import jax
import jax.numpy as jnp
import numpy as np
from jax import lax
from jax.experimental import pallas as pl
from jax.experimental.pallas import tpu as pltpu


def _attention_kernel(fuse_qkv, use_bf16_exp, tq, x_ref, gamma_ref, *rest):
    if fuse_qkv:
        wqkv_ref, bqkv_ref, wp_ref, bp_ref, o_ref = rest
    else:
        (wq_ref, wk_ref, wv_ref,
         bq_ref, bk_ref, bv_ref, wp_ref, bp_ref, o_ref) = rest

    F, N, C = x_ref.shape

    # --- RMS_norm over channels: x / max(||x||, 1e-12) * sqrt(C) * gamma ---
    # sqrt(C) is pre-folded into gamma; rsqrt runs on the EUP (no VALU divide).
    x = x_ref[...]                                        # (F, N, C) f32
    ss = jnp.sum(x * x, axis=-1, keepdims=True)
    inv = lax.rsqrt(jnp.maximum(ss, 1e-24))               # == 1 / max(||x||, 1e-12)
    xn = x * inv * gamma_ref[...]                         # (F, N, C) f32
    # x is not referenced below: the residual re-reads x_ref at the end so the
    # f32 input does not stay live in vregs across the matmuls.

    # --- to_qkv (1x1 conv == per-token linear), bf16 MXU, f32 accumulate ---
    xn2 = xn.astype(jnp.bfloat16).reshape(F * N, C)
    if fuse_qkv:
        qkv = jnp.dot(xn2, wqkv_ref[...],
                      preferred_element_type=jnp.float32) + bqkv_ref[...]
        # slices at multiples of C (>=128) are vreg-tile aligned -> free
        q, k, v = qkv[:, :C], qkv[:, C:2 * C], qkv[:, 2 * C:]
    else:
        q = jnp.dot(xn2, wq_ref[...], preferred_element_type=jnp.float32) + bq_ref[...]
        k = jnp.dot(xn2, wk_ref[...], preferred_element_type=jnp.float32) + bk_ref[...]
        v = jnp.dot(xn2, wv_ref[...], preferred_element_type=jnp.float32) + bv_ref[...]
    q = q.reshape(F, N, C).astype(jnp.bfloat16)           # 1/sqrt(C) already in Wq/bq
    k = k.reshape(F, N, C).astype(jnp.bfloat16)
    v = v.reshape(F, N, C).astype(jnp.bfloat16)

    # --- scaled_dot_product_attention (single head, no mask) ---
    def attend(q_blk):
        # NT-form batched matmul: contract channels of both operands, so no
        # XLU transpose of k is materialized.
        s = lax.dot_general(q_blk, k, (((2,), (2,)), ((0,), (0,))),
                            preferred_element_type=jnp.float32)    # (F, tq, N)
        m = jnp.max(s, axis=-1, keepdims=True)
        if use_bf16_exp:                                  # bf16 EUP on v6e/v7x
            p = jnp.exp((s - m).astype(jnp.bfloat16))
            l = jnp.sum(p.astype(jnp.float32), axis=-1, keepdims=True)
            pv = p
        else:                                             # v5e: no bf16 EUP/VPU
            p = jnp.exp(s - m)
            l = jnp.sum(p, axis=-1, keepdims=True)
            pv = p.astype(jnp.bfloat16)
        acc = lax.dot_general(pv, v, (((2,), (1,)), ((0,), (0,))),
                              preferred_element_type=jnp.float32)  # (F, tq, C)
        # Normalize AFTER the PV matmul: O(N*C) scaling instead of O(N^2).
        return acc * pl.reciprocal(l, approx=True)        # EUP reciprocal

    if tq >= N:
        attn = attend(q)
    else:
        # Flash-style q-tiling: k/v for the frame are fully resident, so each
        # (tq, N) score slab gets an independent softmax (no running stats).
        attn = jnp.concatenate(
            [attend(q[:, i * tq:(i + 1) * tq, :]) for i in range(N // tq)],
            axis=1)

    # --- proj (1x1 conv == per-token linear) + residual (re-read from VMEM) ---
    out = jnp.dot(attn.astype(jnp.bfloat16).reshape(F * N, C), wp_ref[...],
                  preferred_element_type=jnp.float32) + bp_ref[...]
    o_ref[...] = x_ref[...] + out.reshape(F, N, C)


def _vmem_limit_bytes():
    """Scoped-VMEM limit = 3/4 of the chip's VMEM (48 MiB on v7x, 96 MiB on
    v5e/v6e); conservative 48 MiB fallback if the query is unavailable."""
    try:
        cap = int(pltpu.get_tpu_info().vmem_capacity_bytes)
    except Exception:
        cap = 64 * 1024 * 1024
    return cap * 3 // 4


def _use_bf16_exp():
    """bf16 exp only where the EUP supports it (v6e / v7x); f32 otherwise."""
    try:
        kind = jax.devices()[0].device_kind.lower()
    except Exception:
        return False
    return ("v6" in kind) or ("v7" in kind)


def _choose_q_tile(n, vmem_limit):
    """Largest q-tile (divisor of N, multiple of 8) whose ~2.5 live (tq, N)
    score slabs fit a fraction of scoped VMEM; tq == N means no tiling."""
    score_budget = max(2 * 1024 * 1024, vmem_limit // 24)
    if 10 * n * n <= score_budget:
        return n
    target = max(128, score_budget // (10 * n))
    tq = n  # TODO(synk): if N has no multiple-of-8 divisor <= target, pad N.
    for cand in range(8, n, 8):
        if n % cand == 0 and cand <= target:
            tq = cand
    return tq


def _choose_frames(bt, n, c, tq, frame_budget):
    """Frames per grid step F (and BT padding): per-step working set =
    double-buffered in/out blocks + live f32/bf16 intermediates + score slabs,
    kept under the frame budget; grid kept >= 2 steps when BT permits."""
    per_frame = 16 * n * c + 24 * n * c + 10 * min(tq, n) * n
    f_cap = max(1, min(bt, frame_budget // max(per_frame, 1)))
    if bt >= 2:
        f_cap = min(f_cap, max(1, (bt + 1) // 2))
    best_div = 1
    for f in range(1, f_cap + 1):
        if bt % f == 0:
            best_div = f
    if best_div * 2 >= f_cap:          # a good divisor exists -> no padding
        return best_div, 0
    return f_cap, (-bt) % f_cap        # awkward BT (e.g. prime): pad instead


def attention_block(x, params):
    """x: (B, C, T, H, W) float32. Returns same shape."""
    B, C, T, H, W = x.shape
    N = H * W
    BT = B * T

    vmem_limit = _vmem_limit_bytes()
    frame_budget = vmem_limit // 4
    tq = _choose_q_tile(N, vmem_limit)
    F, pad = _choose_frames(BT, N, C, tq, frame_budget)
    BTp = BT + pad
    fuse_qkv = (C % 128 == 0)
    use_bf16_exp = _use_bf16_exp()

    # (B, C, T, H, W) -> (B, T, H, W, C) -> (BT, N, C)
    # TODO(synk): keep the surrounding model channels-last (or use
    # CompilerParams(allow_input_fusion)) so these two full-activation HBM
    # transposes fuse away instead of doubling the I/O around the kernel.
    xr = jnp.transpose(x, (0, 2, 3, 4, 1)).reshape(BT, N, C)
    if pad:
        xr = jnp.pad(xr, ((0, pad), (0, 0), (0, 0)))

    # Parameter prep: fold 1/sqrt(C) into Wq/bq and sqrt(C) into gamma, cast
    # weights to bf16 for the MXU (biases stay f32).
    inv_scale = 1.0 / math.sqrt(C)
    gamma = (params["gamma"].reshape(1, C) * (C ** 0.5)).astype(jnp.float32)
    wqkv = params["wqkv"]                       # (C, 3C) == conv_w[:, :, 0, 0].T
    bqkv = params["bqkv"]
    wp = params["wp"].astype(jnp.bfloat16)      # (C, C) == conv_w[:, :, 0, 0].T
    bp = params["bp"].reshape(1, C).astype(jnp.float32)

    # NOTE(synk): weight/bias blocks are grid-invariant; pipeline_mode=
    # pl.Buffered(1) on their specs would drop the dead second pipeline buffer
    # (mainly a v7x VMEM win) — left at the default here for portability.
    const2d = lambda shape: pl.BlockSpec(shape, lambda i: (0, 0))
    frame_spec = pl.BlockSpec((F, N, C), lambda i: (i, 0, 0))
    # NOTE(synk): with production C >= 128 the (N, C) layout is lane-dense; the
    # C=16 test case under-fills lanes but keeps the same code path (test-only).

    if fuse_qkv:
        qscale = jnp.concatenate([jnp.full((C,), inv_scale, jnp.float32),
                                  jnp.ones((2 * C,), jnp.float32)])
        w_args = ((wqkv * qscale[None, :]).astype(jnp.bfloat16),
                  (bqkv * qscale).reshape(1, 3 * C).astype(jnp.float32),
                  wp, bp)
        w_specs = [const2d((C, 3 * C)), const2d((1, 3 * C)),
                   const2d((C, C)), const2d((1, C))]
    else:
        wq = (wqkv[:, :C] * inv_scale).astype(jnp.bfloat16)
        wk = wqkv[:, C:2 * C].astype(jnp.bfloat16)
        wv = wqkv[:, 2 * C:].astype(jnp.bfloat16)
        bq = (bqkv[:C] * inv_scale).reshape(1, C).astype(jnp.float32)
        bk = bqkv[C:2 * C].reshape(1, C).astype(jnp.float32)
        bv = bqkv[2 * C:].reshape(1, C).astype(jnp.float32)
        w_args = (wq, wk, wv, bq, bk, bv, wp, bp)
        w_specs = ([const2d((C, C))] * 3 + [const2d((1, C))] * 3
                   + [const2d((C, C)), const2d((1, C))])

    kernel = functools.partial(_attention_kernel, fuse_qkv, use_bf16_exp, tq)

    out = pl.pallas_call(
        kernel,
        out_shape=jax.ShapeDtypeStruct((BTp, N, C), x.dtype),
        grid_spec=pltpu.PrefetchScalarGridSpec(
            num_scalar_prefetch=0,
            grid=(BTp // F,),
            in_specs=[frame_spec, const2d((1, C))] + w_specs,
            out_specs=frame_spec,
        ),
        compiler_params=pltpu.CompilerParams(
            dimension_semantics=("parallel",),
            vmem_limit_bytes=vmem_limit),
    )(xr, gamma, *w_args)

    out = out[:BT]
    # (BT, N, C) -> (B, C, T, H, W)
    return jnp.transpose(out.reshape(B, T, H, W, C), (0, 4, 1, 2, 3))


def attention_block_ref(x, params):
    """Pure-JAX f32 reference mirroring the PyTorch forward."""
    B, C, T, H, W = x.shape
    N = H * W
    xr = jnp.transpose(x, (0, 2, 3, 4, 1)).reshape(B * T, N, C)
    nrm = jnp.sqrt(jnp.sum(xr * xr, axis=-1, keepdims=True))
    xn = xr / jnp.maximum(nrm, 1e-12) * (C ** 0.5) * params["gamma"].reshape(1, 1, C)
    qkv = jnp.einsum("bnc,cd->bnd", xn, params["wqkv"]) + params["bqkv"].reshape(1, 1, -1)
    q, k, v = qkv[..., :C], qkv[..., C:2 * C], qkv[..., 2 * C:]
    s = jnp.einsum("bnc,bmc->bnm", q, k) / math.sqrt(C)
    p = jax.nn.softmax(s, axis=-1)
    o = jnp.einsum("bnm,bmc->bnc", p, v)
    out = jnp.einsum("bnc,cd->bnd", o, params["wp"]) + params["bp"].reshape(1, 1, C)
    out = xr + out
    return jnp.transpose(out.reshape(B, T, H, W, C), (0, 4, 1, 2, 3))


if __name__ == "__main__":
    B, C, T, H, W = 2, 16, 2, 8, 8

    key = jax.random.PRNGKey(0)
    kx, kqkv, kbq, kwp, kbp = jax.random.split(key, 5)

    x = jax.random.normal(kx, (B, C, T, H, W), dtype=jnp.float32)

    # Deterministic synthetic parameters (module shapes: gamma (C,1,1),
    # to_qkv weight (3C, C, 1, 1) + bias (3C,), proj weight (C, C, 1, 1) + bias (C,)).
    # NOTE: the module zero-inits proj.weight; small random weights here so the
    # attention path is actually exercised/checked.
    params = {
        "gamma": jnp.ones((C,), dtype=jnp.float32),
        "wqkv": 0.1 * jax.random.normal(kqkv, (C, 3 * C), dtype=jnp.float32),
        "bqkv": 0.1 * jax.random.normal(kbq, (3 * C,), dtype=jnp.float32),
        "wp": 0.1 * jax.random.normal(kwp, (C, C), dtype=jnp.float32),
        "bp": 0.1 * jax.random.normal(kbp, (C,), dtype=jnp.float32),
    }

    out = attention_block(x, params)
    out = jax.block_until_ready(out)

    ref = attention_block_ref(x, params)
    # bf16 matmul inputs + approx softmax reciprocal (+ bf16 exp on v6e/v7x)
    # => ~1e-2-level agreement.
    np.testing.assert_allclose(np.asarray(out), np.asarray(ref), rtol=2e-2, atol=2e-2)

    print("KERNEL_OK")
</pallas_src>

<mosaic_0001>
module attributes {stable_mosaic.version = 11 : i64} {
  func.func @_attention_kernel(%arg0: i32, %arg1: memref<2x64x16xf32, #tpu.memory_space<vmem>>, %arg2: memref<1x16xf32, #tpu.memory_space<vmem>>, %arg3: memref<16x16xbf16, #tpu.memory_space<vmem>>, %arg4: memref<16x16xbf16, #tpu.memory_space<vmem>>, %arg5: memref<16x16xbf16, #tpu.memory_space<vmem>>, %arg6: memref<1x16xf32, #tpu.memory_space<vmem>>, %arg7: memref<1x16xf32, #tpu.memory_space<vmem>>, %arg8: memref<1x16xf32, #tpu.memory_space<vmem>>, %arg9: memref<16x16xbf16, #tpu.memory_space<vmem>>, %arg10: memref<1x16xf32, #tpu.memory_space<vmem>>, %arg11: memref<2x64x16xf32, #tpu.memory_space<vmem>>) attributes {dimension_semantics = [#tpu.dimension_semantics<parallel>], iteration_bounds = array<i64: 2>, scalar_prefetch = 0 : i64, scratch_operands = 0 : i64, tpu.core_type = #tpu.core_type<tc>, window_params = [{transform_indices = @transform_0, window_bounds = array<i64: 2, 64, 16>}, {pipeline_mode = #tpu.pipeline_mode<synchronous>, transform_indices = @transform_1, window_bounds = array<i64: 1, 16>}, {pipeline_mode = #tpu.pipeline_mode<synchronous>, transform_indices = @transform_2, window_bounds = array<i64: 16, 16>}, {pipeline_mode = #tpu.pipeline_mode<synchronous>, transform_indices = @transform_3, window_bounds = array<i64: 16, 16>}, {pipeline_mode = #tpu.pipeline_mode<synchronous>, transform_indices = @transform_4, window_bounds = array<i64: 16, 16>}, {pipeline_mode = #tpu.pipeline_mode<synchronous>, transform_indices = @transform_5, window_bounds = array<i64: 1, 16>}, {pipeline_mode = #tpu.pipeline_mode<synchronous>, transform_indices = @transform_6, window_bounds = array<i64: 1, 16>}, {pipeline_mode = #tpu.pipeline_mode<synchronous>, transform_indices = @transform_7, window_bounds = array<i64: 1, 16>}, {pipeline_mode = #tpu.pipeline_mode<synchronous>, transform_indices = @transform_8, window_bounds = array<i64: 16, 16>}, {pipeline_mode = #tpu.pipeline_mode<synchronous>, transform_indices = @transform_9, window_bounds = array<i64: 1, 16>}, {transform_indices = @transform_10, window_bounds = array<i64: 2, 64, 16>}]} {
    %c0 = arith.constant 0 : index
    %c0_0 = arith.constant 0 : index
    %c0_1 = arith.constant 0 : index
    %0 = vector.load %arg1[%c0, %c0_0, %c0_1] : memref<2x64x16xf32, #tpu.memory_space<vmem>>, vector<2x64x16xf32>
    %1 = arith.mulf %0, %0 : vector<2x64x16xf32>
    %cst = arith.constant dense<0.000000e+00> : vector<2x64xf32>
    %2 = vector.multi_reduction <add>, %1, %cst [2] : vector<2x64x16xf32> to vector<2x64xf32>
    %3 = vector.shape_cast %2 : vector<2x64xf32> to vector<2x64x1xf32>
    %cst_2 = arith.constant 1.000000e-24 : f32
    %4 = vector.broadcast %cst_2 : f32 to vector<2x64x1xf32>
    %5 = arith.maximumf %3, %4 : vector<2x64x1xf32>
    %6 = math.rsqrt %5 : vector<2x64x1xf32>
    %7 = vector.broadcast %6 : vector<2x64x1xf32> to vector<2x64x16xf32>
    %8 = arith.mulf %0, %7 : vector<2x64x16xf32>
    %c0_3 = arith.constant 0 : index
    %c0_4 = arith.constant 0 : index
    %9 = vector.load %arg2[%c0_3, %c0_4] : memref<1x16xf32, #tpu.memory_space<vmem>>, vector<1x16xf32>
    %10 = vector.shape_cast %9 : vector<1x16xf32> to vector<1x1x16xf32>
    %11 = vector.broadcast %10 : vector<1x1x16xf32> to vector<2x64x16xf32>
    %12 = arith.mulf %8, %11 : vector<2x64x16xf32>
    %13 = arith.truncf %12 : vector<2x64x16xf32> to vector<2x64x16xbf16>
    %14 = vector.shape_cast %13 : vector<2x64x16xbf16> to vector<128x16xbf16>
    %c0_5 = arith.constant 0 : index
    %c0_6 = arith.constant 0 : index
    %15 = vector.load %arg3[%c0_5, %c0_6] : memref<16x16xbf16, #tpu.memory_space<vmem>>, vector<16x16xbf16>
    %cst_7 = arith.constant dense<0.000000e+00> : vector<128x16xf32>
    %16 = tpu.matmul %14, %15, %cst_7 {dimension_numbers = #tpu.dot_dimension_numbers<[1], [0], [0], [1], [0, 0, 1, 1], [], []>} : vector<128x16xbf16>, vector<16x16xbf16>, vector<128x16xf32> -> vector<128x16xf32>
    %c0_8 = arith.constant 0 : index
    %c0_9 = arith.constant 0 : index
    %17 = vector.load %arg6[%c0_8, %c0_9] : memref<1x16xf32, #tpu.memory_space<vmem>>, vector<1x16xf32>
    %18 = vector.broadcast %17 : vector<1x16xf32> to vector<128x16xf32>
    %19 = arith.addf %16, %18 : vector<128x16xf32>
    %c0_10 = arith.constant 0 : index
    %c0_11 = arith.constant 0 : index
    %20 = vector.load %arg4[%c0_10, %c0_11] : memref<16x16xbf16, #tpu.memory_space<vmem>>, vector<16x16xbf16>
    %cst_12 = arith.constant dense<0.000000e+00> : vector<128x16xf32>
    %21 = tpu.matmul %14, %20, %cst_12 {dimension_numbers = #tpu.dot_dimension_numbers<[1], [0], [0], [1], [0, 0, 1, 1], [], []>} : vector<128x16xbf16>, vector<16x16xbf16>, vector<128x16xf32> -> vector<128x16xf32>
    %c0_13 = arith.constant 0 : index
    %c0_14 = arith.constant 0 : index
    %22 = vector.load %arg7[%c0_13, %c0_14] : memref<1x16xf32, #tpu.memory_space<vmem>>, vector<1x16xf32>
    %23 = vector.broadcast %22 : vector<1x16xf32> to vector<128x16xf32>
    %24 = arith.addf %21, %23 : vector<128x16xf32>
    %c0_15 = arith.constant 0 : index
    %c0_16 = arith.constant 0 : index
    %25 = vector.load %arg5[%c0_15, %c0_16] : memref<16x16xbf16, #tpu.memory_space<vmem>>, vector<16x16xbf16>
    %cst_17 = arith.constant dense<0.000000e+00> : vector<128x16xf32>
    %26 = tpu.matmul %14, %25, %cst_17 {dimension_numbers = #tpu.dot_dimension_numbers<[1], [0], [0], [1], [0, 0, 1, 1], [], []>} : vector<128x16xbf16>, vector<16x16xbf16>, vector<128x16xf32> -> vector<128x16xf32>
    %c0_18 = arith.constant 0 : index
    %c0_19 = arith.constant 0 : index
    %27 = vector.load %arg8[%c0_18, %c0_19] : memref<1x16xf32, #tpu.memory_space<vmem>>, vector<1x16xf32>
    %28 = vector.broadcast %27 : vector<1x16xf32> to vector<128x16xf32>
    %29 = arith.addf %26, %28 : vector<128x16xf32>
    %30 = vector.shape_cast %19 : vector<128x16xf32> to vector<2x64x16xf32>
    %31 = arith.truncf %30 : vector<2x64x16xf32> to vector<2x64x16xbf16>
    %32 = vector.shape_cast %24 : vector<128x16xf32> to vector<2x64x16xf32>
    %33 = arith.truncf %32 : vector<2x64x16xf32> to vector<2x64x16xbf16>
    %34 = vector.shape_cast %29 : vector<128x16xf32> to vector<2x64x16xf32>
    %35 = arith.truncf %34 : vector<2x64x16xf32> to vector<2x64x16xbf16>
    %cst_20 = arith.constant dense<0.000000e+00> : vector<2x64x64xf32>
    %36 = tpu.matmul %31, %33, %cst_20 {dimension_numbers = #tpu.dot_dimension_numbers<[2], [2], [1], [1], [0, 0, 0, 1, 1, 1], [0], [0]>} : vector<2x64x16xbf16>, vector<2x64x16xbf16>, vector<2x64x64xf32> -> vector<2x64x64xf32>
    %cst_21 = arith.constant dense<0xFF800000> : vector<2x64xf32>
    %37 = vector.multi_reduction <maximumf>, %36, %cst_21 [2] : vector<2x64x64xf32> to vector<2x64xf32>
    %38 = vector.shape_cast %37 : vector<2x64xf32> to vector<2x64x1xf32>
    %39 = vector.broadcast %38 : vector<2x64x1xf32> to vector<2x64x64xf32>
    %40 = arith.subf %36, %39 : vector<2x64x64xf32>
    %41 = math.exp %40 : vector<2x64x64xf32>
    %cst_22 = arith.constant dense<0.000000e+00> : vector<2x64xf32>
    %42 = vector.multi_reduction <add>, %41, %cst_22 [2] : vector<2x64x64xf32> to vector<2x64xf32>
    %43 = vector.shape_cast %42 : vector<2x64xf32> to vector<2x64x1xf32>
    %44 = arith.truncf %41 : vector<2x64x64xf32> to vector<2x64x64xbf16>
    %cst_23 = arith.constant dense<0.000000e+00> : vector<2x64x16xf32>
    %45 = tpu.matmul %44, %35, %cst_23 {dimension_numbers = #tpu.dot_dimension_numbers<[2], [1], [1], [2], [0, 0, 0, 1, 1, 2], [0], [0]>} : vector<2x64x64xbf16>, vector<2x64x16xbf16>, vector<2x64x16xf32> -> vector<2x64x16xf32>
    %46 = tpu.reciprocal %43 {approx = true} : vector<2x64x1xf32> -> vector<2x64x1xf32>
    %47 = vector.broadcast %46 : vector<2x64x1xf32> to vector<2x64x16xf32>
    %48 = arith.mulf %45, %47 : vector<2x64x16xf32>
    %49 = arith.truncf %48 : vector<2x64x16xf32> to vector<2x64x16xbf16>
    %50 = vector.shape_cast %49 : vector<2x64x16xbf16> to vector<128x16xbf16>
    %c0_24 = arith.constant 0 : index
    %c0_25 = arith.constant 0 : index
    %51 = vector.load %arg9[%c0_24, %c0_25] : memref<16x16xbf16, #tpu.memory_space<vmem>>, vector<16x16xbf16>
    %cst_26 = arith.constant dense<0.000000e+00> : vector<128x16xf32>
    %52 = tpu.matmul %50, %51, %cst_26 {dimension_numbers = #tpu.dot_dimension_numbers<[1], [0], [0], [1], [0, 0, 1, 1], [], []>} : vector<128x16xbf16>, vector<16x16xbf16>, vector<128x16xf32> -> vector<128x16xf32>
    %c0_27 = arith.constant 0 : index
    %c0_28 = arith.constant 0 : index
    %53 = vector.load %arg10[%c0_27, %c0_28] : memref<1x16xf32, #tpu.memory_space<vmem>>, vector<1x16xf32>
    %54 = vector.broadcast %53 : vector<1x16xf32> to vector<128x16xf32>
    %55 = arith.addf %52, %54 : vector<128x16xf32>
    %c0_29 = arith.constant 0 : index
    %c0_30 = arith.constant 0 : index
    %c0_31 = arith.constant 0 : index
    %56 = vector.load %arg1[%c0_29, %c0_30, %c0_31] : memref<2x64x16xf32, #tpu.memory_space<vmem>>, vector<2x64x16xf32>
    %57 = vector.shape_cast %55 : vector<128x16xf32> to vector<2x64x16xf32>
    %58 = arith.addf %56, %57 : vector<2x64x16xf32>
    %c0_32 = arith.constant 0 : index
    %c0_33 = arith.constant 0 : index
    %c0_34 = arith.constant 0 : index
    %59 = vector.load %arg11[%c0_32, %c0_33, %c0_34] : memref<2x64x16xf32, #tpu.memory_space<vmem>>, vector<2x64x16xf32>
    tpu.vector_store %arg11[%c0_32, %c0_33, %c0_34], %58 {strides = array<i32>} : memref<2x64x16xf32, #tpu.memory_space<vmem>>, vector<2x64x16xf32>,
    return
  }
  func.func @transform_0(%arg0: i32) -> (i32, i32, i32) {
    %c0_i32 = arith.constant 0 : i32
    %c0_i32_0 = arith.constant 0 : i32
    %c0_i32_1 = arith.constant 0 : i32
    return %arg0, %c0_i32, %c0_i32_0 : i32, i32, i32
  }
  func.func @transform_1(%arg0: i32) -> (i32, i32) {
    %c0_i32 = arith.constant 0 : i32
    %c0_i32_0 = arith.constant 0 : i32
    %c0_i32_1 = arith.constant 0 : i32
    return %c0_i32, %c0_i32_0 : i32, i32
  }
  func.func @transform_2(%arg0: i32) -> (i32, i32) {
    %c0_i32 = arith.constant 0 : i32
    %c0_i32_0 = arith.constant 0 : i32
    %c0_i32_1 = arith.constant 0 : i32
    return %c0_i32, %c0_i32_0 : i32, i32
  }
  func.func @transform_3(%arg0: i32) -> (i32, i32) {
    %c0_i32 = arith.constant 0 : i32
    %c0_i32_0 = arith.constant 0 : i32
    %c0_i32_1 = arith.constant 0 : i32
    return %c0_i32, %c0_i32_0 : i32, i32
  }
  func.func @transform_4(%arg0: i32) -> (i32, i32) {
    %c0_i32 = arith.constant 0 : i32
    %c0_i32_0 = arith.constant 0 : i32
    %c0_i32_1 = arith.constant 0 : i32
    return %c0_i32, %c0_i32_0 : i32, i32
  }
  func.func @transform_5(%arg0: i32) -> (i32, i32) {
    %c0_i32 = arith.constant 0 : i32
    %c0_i32_0 = arith.constant 0 : i32
    %c0_i32_1 = arith.constant 0 : i32
    return %c0_i32, %c0_i32_0 : i32, i32
  }
  func.func @transform_6(%arg0: i32) -> (i32, i32) {
    %c0_i32 = arith.constant 0 : i32
    %c0_i32_0 = arith.constant 0 : i32
    %c0_i32_1 = arith.constant 0 : i32
    return %c0_i32, %c0_i32_0 : i32, i32
  }
  func.func @transform_7(%arg0: i32) -> (i32, i32) {
    %c0_i32 = arith.constant 0 : i32
    %c0_i32_0 = arith.constant 0 : i32
    %c0_i32_1 = arith.constant 0 : i32
    return %c0_i32, %c0_i32_0 : i32, i32
  }
  func.func @transform_8(%arg0: i32) -> (i32, i32) {
    %c0_i32 = arith.constant 0 : i32
    %c0_i32_0 = arith.constant 0 : i32
    %c0_i32_1 = arith.constant 0 : i32
    return %c0_i32, %c0_i32_0 : i32, i32
  }
  func.func @transform_9(%arg0: i32) -> (i32, i32) {
    %c0_i32 = arith.constant 0 : i32
    %c0_i32_0 = arith.constant 0 : i32
    %c0_i32_1 = arith.constant 0 : i32
    return %c0_i32, %c0_i32_0 : i32, i32
  }
  func.func @transform_10(%arg0: i32) -> (i32, i32, i32) {
    %c0_i32 = arith.constant 0 : i32
    %c0_i32_0 = arith.constant 0 : i32
    %c0_i32_1 = arith.constant 0 : i32
    return %arg0, %c0_i32, %c0_i32_0 : i32, i32, i32
  }
}

</mosaic_0001>

<llo_original>
// kernel: tpu_custom_call.1
$region0: #{tpu_custom_call.1}
  #allocation0 [shape = 'u32[]', space=smem, size = 0x4, offset = 0x4, fixed_abs, tag = 'smem constant byte address 0x4 - core index']
  #allocation1 [shape = 'u32[144,128]{1,0:T(1,128)}', space=vmem, size = 0x12000, scoped, tag = 'internal scratch']
  %s0 = inlined_call_operand.vmem [shape: f32[4,64,16], index: 0, kind: input, shape index: {}]
  %s1 = inlined_call_operand.vmem [shape: f32[1,16], index: 1, kind: input, shape index: {}]
  %s2 = inlined_call_operand.vmem [shape: bf16[16,16], index: 2, kind: input, shape index: {}]
  %s3 = inlined_call_operand.vmem [shape: bf16[16,16], index: 3, kind: input, shape index: {}]
  %s4 = inlined_call_operand.vmem [shape: bf16[16,16], index: 4, kind: input, shape index: {}]
  %s5 = inlined_call_operand.vmem [shape: f32[1,16], index: 5, kind: input, shape index: {}]
  %s6 = inlined_call_operand.vmem [shape: f32[1,16], index: 6, kind: input, shape index: {}]
  %s7 = inlined_call_operand.vmem [shape: f32[1,16], index: 7, kind: input, shape index: {}]
  %s8 = inlined_call_operand.vmem [shape: bf16[16,16], index: 8, kind: input, shape index: {}]
  %s9 = inlined_call_operand.vmem [shape: f32[1,16], index: 9, kind: input, shape index: {}]
  %s10 = inlined_call_operand.vmem [shape: f32[4,64,16], index: 10, kind: output, shape index: {}]
  %s11 = sld [smem:[#allocation0]]
  $region73: #{tpu_custom_call.1} parent=0
    _
  %s13 = ssub.s32 1, %s11
  %s14 = scalar_select 0, %s13, %s11
  loop: start=0, step=1, limit=4
  $region2: #{tpu_custom_call.1} parent=0 // loop_pre_header
    _
  $region3: #{tpu_custom_call.1} parent=0 // loop_header
    %s16 = sphi 0, %s20
    %p17 = scmp.ge.s32.totalorder %s16, 4
    %s26 = sphi 0, %s28
    %s29 = sphi 0, %s26
    %s30 = sphi 0, %s29
    %s46 = sphi 0, %s30
    %s50 = sphi 0, %s50
    %s52 = sphi 0, %s50
    %s53 = sphi 0, %s52
    %s67 = sphi 0, %s53
    %s71 = sphi 0, %s71
    %s73 = sphi 0, %s71
    %s74 = sphi 0, %s73
    %s88 = sphi 0, %s74
    %s92 = sphi 0, %s92
    %s94 = sphi 0, %s92
    %s95 = sphi 0, %s94
    %s109 = sphi 0, %s95
    %s113 = sphi 0, %s113
    %s115 = sphi 0, %s113
    %s116 = sphi 0, %s115
    %s130 = sphi 0, %s116
    %s134 = sphi 0, %s134
    %s136 = sphi 0, %s134
    %s137 = sphi 0, %s136
    %s151 = sphi 0, %s137
    %s155 = sphi 0, %s155
    %s157 = sphi 0, %s155
    %s158 = sphi 0, %s157
    %s172 = sphi 0, %s158
    %s176 = sphi 0, %s176
    %s178 = sphi 0, %s176
    %s179 = sphi 0, %s178
    %s193 = sphi 0, %s179
    %s197 = sphi 0, %s197
    %s199 = sphi 0, %s197
    %s200 = sphi 0, %s199
    %s214 = sphi 0, %s200
    %s218 = sphi 0, %s218
    %s220 = sphi 0, %s218
    %s221 = sphi 0, %s220
    %s235 = sphi 0, %s221
    %s241 = sphi 0, %s243
    %s244 = sphi 0, %s241
    %s245 = sphi 0, %s244
    %s261 = sphi 0, %s245
  $region4: #{tpu_custom_call.1} parent=0 // loop_header_branch
    %19 = sbr.rel (%p17) target = $region8
  $region5: #{tpu_custom_call.1} parent=0 // loop_body
    %s21 = ssub.s32 %s16, 1
    %s22 = ssub.s32 %s16, 2
    %s23 = sadd.s32 %s16, 1
    %s24 = ssub.s32 %s16, %s23
    %p25 = scmp.eq.s32.totalorder %s24, 0
    %s27 = sadd.s32 %s26, 1
    %s28 = scalar_select %p25, %s26, %s27
    %p31 = pneg %p25
    %p32 = scmp.eq.s32.totalorder %s16, 1
    %p33 = por %p31, %p32
    %p34 = scmp.ne.s32.totalorder %s26, %s29
    %p35 = scmp.eq.s32.totalorder %s16, 0
    %p36 = por %p34, %p35
    %p37 = scmp.ne.s32.totalorder %s26, %s29
    %p38 = scmp.eq.s32.totalorder %s21, 1
    %p39 = por %p37, %p38
    %p40 = scmp.ne.s32.totalorder %s29, %s30
    %p41 = scmp.eq.s32.totalorder %s21, 0
    %p42 = por %p40, %p41
    %p43 = scmp.ne.s32.totalorder %s29, %s30
    %p44 = scmp.eq.s32.totalorder %s22, 1
    %p45 = por %p43, %p44
    %p47 = scmp.ne.s32.totalorder %s30, %s46
    %p48 = scmp.eq.s32.totalorder %s22, 0
    %p49 = por %p47, %p48
    %s51 = sadd.s32 %s50, 1
    %p54 = scmp.eq.s32.totalorder %s16, 1
    %p55 = scmp.ne.s32.totalorder %s50, %s52
    %p56 = scmp.eq.s32.totalorder %s16, 0
    %p57 = por %p55, %p56
    %p58 = scmp.ne.s32.totalorder %s50, %s52
    %p59 = scmp.eq.s32.totalorder %s21, 1
    %p60 = por %p58, %p59
    %p61 = scmp.ne.s32.totalorder %s52, %s53
    %p62 = scmp.eq.s32.totalorder %s21, 0
    %p63 = por %p61, %p62
    %p64 = scmp.ne.s32.totalorder %s52, %s53
    %p65 = scmp.eq.s32.totalorder %s22, 1
    %p66 = por %p64, %p65
    %p68 = scmp.ne.s32.totalorder %s53, %s67
    %p69 = scmp.eq.s32.totalorder %s22, 0
    %p70 = por %p68, %p69
    %s72 = sadd.s32 %s71, 1
    %p75 = scmp.eq.s32.totalorder %s16, 1
    %p76 = scmp.ne.s32.totalorder %s71, %s73
    %p77 = scmp.eq.s32.totalorder %s16, 0
    %p78 = por %p76, %p77
    %p79 = scmp.ne.s32.totalorder %s71, %s73
    %p80 = scmp.eq.s32.totalorder %s21, 1
    %p81 = por %p79, %p80
    %p82 = scmp.ne.s32.totalorder %s73, %s74
    %p83 = scmp.eq.s32.totalorder %s21, 0
    %p84 = por %p82, %p83
    %p85 = scmp.ne.s32.totalorder %s73, %s74
    %p86 = scmp.eq.s32.totalorder %s22, 1
    %p87 = por %p85, %p86
    %p89 = scmp.ne.s32.totalorder %s74, %s88
    %p90 = scmp.eq.s32.totalorder %s22, 0
    %p91 = por %p89, %p90
    %s93 = sadd.s32 %s92, 1
    %p96 = scmp.eq.s32.totalorder %s16, 1
    %p97 = scmp.ne.s32.totalorder %s92, %s94
    %p98 = scmp.eq.s32.totalorder %s16, 0
    %p99 = por %p97, %p98
    %p100 = scmp.ne.s32.totalorder %s92, %s94
    %p101 = scmp.eq.s32.totalorder %s21, 1
    %p102 = por %p100, %p101
    %p103 = scmp.ne.s32.totalorder %s94, %s95
    %p104 = scmp.eq.s32.totalorder %s21, 0
    %p105 = por %p103, %p104
    %p106 = scmp.ne.s32.totalorder %s94, %s95
    %p107 = scmp.eq.s32.totalorder %s22, 1
    %p108 = por %p106, %p107
    %p110 = scmp.ne.s32.totalorder %s95, %s109
    %p111 = scmp.eq.s32.totalorder %s22, 0
    %p112 = por %p110, %p111
    %s114 = sadd.s32 %s113, 1
    %p117 = scmp.eq.s32.totalorder %s16, 1
    %p118 = scmp.ne.s32.totalorder %s113, %s115
    %p119 = scmp.eq.s32.totalorder %s16, 0
    %p120 = por %p118, %p119
    %p121 = scmp.ne.s32.totalorder %s113, %s115
    %p122 = scmp.eq.s32.totalorder %s21, 1
    %p123 = por %p121, %p122
    %p124 = scmp.ne.s32.totalorder %s115, %s116
    %p125 = scmp.eq.s32.totalorder %s21, 0
    %p126 = por %p124, %p125
    %p127 = scmp.ne.s32.totalorder %s115, %s116
    %p128 = scmp.eq.s32.totalorder %s22, 1
    %p129 = por %p127, %p128
    %p131 = scmp.ne.s32.totalorder %s116, %s130
    %p132 = scmp.eq.s32.totalorder %s22, 0
    %p133 = por %p131, %p132
    %s135 = sadd.s32 %s134, 1
    %p138 = scmp.eq.s32.totalorder %s16, 1
    %p139 = scmp.ne.s32.totalorder %s134, %s136
    %p140 = scmp.eq.s32.totalorder %s16, 0
    %p141 = por %p139, %p140
    %p142 = scmp.ne.s32.totalorder %s134, %s136
    %p143 = scmp.eq.s32.totalorder %s21, 1
    %p144 = por %p142, %p143
    %p145 = scmp.ne.s32.totalorder %s136, %s137
    %p146 = scmp.eq.s32.totalorder %s21, 0
    %p147 = por %p145, %p146
    %p148 = scmp.ne.s32.totalorder %s136, %s137
    %p149 = scmp.eq.s32.totalorder %s22, 1
    %p150 = por %p148, %p149
    %p152 = scmp.ne.s32.totalorder %s137, %s151
    %p153 = scmp.eq.s32.totalorder %s22, 0
    %p154 = por %p152, %p153
    %s156 = sadd.s32 %s155, 1
    %p159 = scmp.eq.s32.totalorder %s16, 1
    %p160 = scmp.ne.s32.totalorder %s155, %s157
    %p161 = scmp.eq.s32.totalorder %s16, 0
    %p162 = por %p160, %p161
    %p163 = scmp.ne.s32.totalorder %s155, %s157
    %p164 = scmp.eq.s32.totalorder %s21, 1
    %p165 = por %p163, %p164
    %p166 = scmp.ne.s32.totalorder %s157, %s158
    %p167 = scmp.eq.s32.totalorder %s21, 0
    %p168 = por %p166, %p167
    %p169 = scmp.ne.s32.totalorder %s157, %s158
    %p170 = scmp.eq.s32.totalorder %s22, 1
    %p171 = por %p169, %p170
    %p173 = scmp.ne.s32.totalorder %s158, %s172
    %p174 = scmp.eq.s32.totalorder %s22, 0
    %p175 = por %p173, %p174
    %s177 = sadd.s32 %s176, 1
    %p180 = scmp.eq.s32.totalorder %s16, 1
    %p181 = scmp.ne.s32.totalorder %s176, %s178
    %p182 = scmp.eq.s32.totalorder %s16, 0
    %p183 = por %p181, %p182
    %p184 = scmp.ne.s32.totalorder %s176, %s178
    %p185 = scmp.eq.s32.totalorder %s21, 1
    %p186 = por %p184, %p185
    %p187 = scmp.ne.s32.totalorder %s178, %s179
    %p188 = scmp.eq.s32.totalorder %s21, 0
    %p189 = por %p187, %p188
    %p190 = scmp.ne.s32.totalorder %s178, %s179
    %p191 = scmp.eq.s32.totalorder %s22, 1
    %p192 = por %p190, %p191
    %p194 = scmp.ne.s32.totalorder %s179, %s193
    %p195 = scmp.eq.s32.totalorder %s22, 0
    %p196 = por %p194, %p195
    %s198 = sadd.s32 %s197, 1
    %p201 = scmp.eq.s32.totalorder %s16, 1
    %p202 = scmp.ne.s32.totalorder %s197, %s199
    %p203 = scmp.eq.s32.totalorder %s16, 0
    %p204 = por %p202, %p203
    %p205 = scmp.ne.s32.totalorder %s197, %s199
    %p206 = scmp.eq.s32.totalorder %s21, 1
    %p207 = por %p205, %p206
    %p208 = scmp.ne.s32.totalorder %s199, %s200
    %p209 = scmp.eq.s32.totalorder %s21, 0
    %p210 = por %p208, %p209
    %p211 = scmp.ne.s32.totalorder %s199, %s200
    %p212 = scmp.eq.s32.totalorder %s22, 1
    %p213 = por %p211, %p212
    %p215 = scmp.ne.s32.totalorder %s200, %s214
    %p216 = scmp.eq.s32.totalorder %s22, 0
    %p217 = por %p215, %p216
    %s219 = sadd.s32 %s218, 1
    %p222 = scmp.eq.s32.totalorder %s16, 1
    %p223 = scmp.ne.s32.totalorder %s218, %s220
    %p224 = scmp.eq.s32.totalorder %s16, 0
    %p225 = por %p223, %p224
    %p226 = scmp.ne.s32.totalorder %s218, %s220
    %p227 = scmp.eq.s32.totalorder %s21, 1
    %p228 = por %p226, %p227
    %p229 = scmp.ne.s32.totalorder %s220, %s221
    %p230 = scmp.eq.s32.totalorder %s21, 0
    %p231 = por %p229, %p230
    %p232 = scmp.ne.s32.totalorder %s220, %s221
    %p233 = scmp.eq.s32.totalorder %s22, 1
    %p234 = por %p232, %p233
    %p236 = scmp.ne.s32.totalorder %s221, %s235
    %p237 = scmp.eq.s32.totalorder %s22, 0
    %p238 = por %p236, %p237
    %s239 = ssub.s32 %s16, %s23
    %p240 = scmp.eq.s32.totalorder %s239, 0
    %s242 = sadd.s32 %s241, 1
    %s243 = scalar_select %p240, %s241, %s242
    %p246 = pneg %p240
    %p247 = scmp.eq.s32.totalorder %s16, 1
    %p248 = por %p246, %p247
    %p249 = scmp.ne.s32.totalorder %s241, %s244
    %p250 = scmp.eq.s32.totalorder %s16, 0
    %p251 = por %p249, %p250
    %p252 = scmp.ne.s32.totalorder %s241, %s244
    %p253 = scmp.eq.s32.totalorder %s21, 1
    %p254 = por %p252, %p253
    %p255 = scmp.ne.s32.totalorder %s244, %s245
    %p256 = scmp.eq.s32.totalorder %s21, 0
    %p257 = por %p255, %p256
    %p258 = scmp.ne.s32.totalorder %s244, %s245
    %p259 = scmp.eq.s32.totalorder %s22, 1
    %p260 = por %p258, %p259
    %p262 = scmp.ne.s32.totalorder %s245, %s261
    %p263 = scmp.eq.s32.totalorder %s22, 0
    %p264 = por %p262, %p263
    %p265 = scmp.le.s32.totalorder 1, %s16
    %p266 = scmp.lt.s32.totalorder %s16, 3
    %p267 = pnand %p265, %p266
    %p268 = pneg %p267
    // Predicated region
    $region9: #{tpu_custom_call.1} parent=5 // pred_check
      _
    $region10: #{tpu_custom_call.1} parent=5 // pred_check_branch
      %270 = sbr.rel (%p267) target = $region12
    $region11: #{tpu_custom_call.1} parent=5 // pred_region
      %s271 = ssub.s32 %s16, 1
      // Predicated region
      $region13: #{tpu_custom_call.1} parent=11 // pred_check
        %p272 = pneg %p63
      $region14: #{tpu_custom_call.1} parent=11 // pred_check_branch
        %274 = sbr.rel (%p272) target = $region16
      $region15: #{tpu_custom_call.1} parent=11 // pred_region
        _
      $region16: #{tpu_custom_call.1} parent=11 // pred_fallthru
        _
      // Predicated region
      $region17: #{tpu_custom_call.1} parent=11 // pred_check
        %p275 = pneg %p84
      $region18: #{tpu_custom_call.1} parent=11 // pred_check_branch
        %277 = sbr.rel (%p275) target = $region20
      $region19: #{tpu_custom_call.1} parent=11 // pred_region
        _
      $region20: #{tpu_custom_call.1} parent=11 // pred_fallthru
        _
      // Predicated region
      $region21: #{tpu_custom_call.1} parent=11 // pred_check
        %p278 = pneg %p105
      $region22: #{tpu_custom_call.1} parent=11 // pred_check_branch
        %280 = sbr.rel (%p278) target = $region24
      $region23: #{tpu_custom_call.1} parent=11 // pred_region
        _
      $region24: #{tpu_custom_call.1} parent=11 // pred_fallthru
        _
      // Predicated region
      $region25: #{tpu_custom_call.1} parent=11 // pred_check
        %p281 = pneg %p126
      $region26: #{tpu_custom_call.1} parent=11 // pred_check_branch
        %283 = sbr.rel (%p281) target = $region28
      $region27: #{tpu_custom_call.1} parent=11 // pred_region
        _
      $region28: #{tpu_custom_call.1} parent=11 // pred_fallthru
        _
      // Predicated region
      $region29: #{tpu_custom_call.1} parent=11 // pred_check
        %p284 = pneg %p147
      $region30: #{tpu_custom_call.1} parent=11 // pred_check_branch
        %286 = sbr.rel (%p284) target = $region32
      $region31: #{tpu_custom_call.1} parent=11 // pred_region
        _
      $region32: #{tpu_custom_call.1} parent=11 // pred_fallthru
        _
      // Predicated region
      $region33: #{tpu_custom_call.1} parent=11 // pred_check
        %p287 = pneg %p168
      $region34: #{tpu_custom_call.1} parent=11 // pred_check_branch
        %289 = sbr.rel (%p287) target = $region36
      $region35: #{tpu_custom_call.1} parent=11 // pred_region
        _
      $region36: #{tpu_custom_call.1} parent=11 // pred_fallthru
        _
      // Predicated region
      $region37: #{tpu_custom_call.1} parent=11 // pred_check
        %p290 = pneg %p189
      $region38: #{tpu_custom_call.1} parent=11 // pred_check_branch
        %292 = sbr.rel (%p290) target = $region40
      $region39: #{tpu_custom_call.1} parent=11 // pred_region
        _
      $region40: #{tpu_custom_call.1} parent=11 // pred_fallthru
        _
      // Predicated region
      $region41: #{tpu_custom_call.1} parent=11 // pred_check
        %p293 = pneg %p210
      $region42: #{tpu_custom_call.1} parent=11 // pred_check_branch
        %295 = sbr.rel (%p293) target = $region44
      $region43: #{tpu_custom_call.1} parent=11 // pred_region
        _
      $region44: #{tpu_custom_call.1} parent=11 // pred_fallthru
        _
      // Predicated region
      $region45: #{tpu_custom_call.1} parent=11 // pred_check
        %p296 = pneg %p231
      $region46: #{tpu_custom_call.1} parent=11 // pred_check_branch
        %298 = sbr.rel (%p296) target = $region48
      $region47: #{tpu_custom_call.1} parent=11 // pred_region
        _
      $region48: #{tpu_custom_call.1} parent=11 // pred_fallthru
        _
    $region12: #{tpu_custom_call.1} parent=5 // pred_fallthru
      _
    %p299 = scmp.lt.s32.totalorder %s16, 2
    // Predicated region
    $region49: #{tpu_custom_call.1} parent=5 // pred_check
      %p300 = pneg %p299
    $region50: #{tpu_custom_call.1} parent=5 // pred_check_branch
      %302 = sbr.rel (%p300) target = $region52
    $region51: #{tpu_custom_call.1} parent=5 // pred_region
      // Predicated region
      $region53: #{tpu_custom_call.1} parent=51 // pred_check
        %p303 = pneg %p36
      $region54: #{tpu_custom_call.1} parent=51 // pred_check_branch
        %305 = sbr.rel (%p303) target = $region56
      $region55: #{tpu_custom_call.1} parent=51 // pred_region
        %s306 = smul.u32 2, %s16
        %p307 = scmp.lt.s32.totalorder %s306, 3
        %s308 = scalar_select %p307, %s306, 3
        %s309 = smul.addr %s308, 8
        %s310 = smul.addr %s309, 8
        %s311 = scalar_lea.vmem %s0, %s310
        %s312 = smul.u32 2, %s16
      $region56: #{tpu_custom_call.1} parent=51 // pred_fallthru
        _
    $region52: #{tpu_custom_call.1} parent=5 // pred_fallthru
      _
    %p313 = scmp.le.s32.totalorder 1, %s16
    %p314 = scmp.lt.s32.totalorder %s16, 3
    %p315 = pnand %p313, %p314
    %p316 = pneg %p315
    // Predicated region
    $region57: #{tpu_custom_call.1} parent=5 // pred_check
      _
    $region58: #{tpu_custom_call.1} parent=5 // pred_check_branch
      %318 = sbr.rel (%p315) target = $region60
    $region59: #{tpu_custom_call.1} parent=5 // pred_region
      %s319 = ssub.s32 %s16, 1
      %s320 = smul.u32 2, %s21
      %p321 = scmp.lt.s32.totalorder %s320, 3
      %s322 = scalar_select %p321, %s320, 3
      %s323 = smul.addr %s322, 8
      %s324 = smul.addr %s323, 8
      %s325 = scalar_lea.vmem %s0, %s324
      %p326 = pneg %p42
      %p327 = pneg %p39
      %p328 = pneg %p63
      %p329 = pneg %p60
      %p330 = pneg %p84
      %p331 = pneg %p81
      %p332 = pneg %p105
      %p333 = pneg %p102
      %p334 = pneg %p126
      %p335 = pneg %p123
      %p336 = pneg %p147
      %p337 = pneg %p144
      %p338 = pneg %p168
      %p339 = pneg %p165
      %p340 = pneg %p189
      %p341 = pneg %p186
      %p342 = pneg %p210
      %p343 = pneg %p207
      %p344 = pneg %p231
      %p345 = pneg %p228
      %p346 = pneg %p257
      %p347 = pneg %p254
      %s348 = smul.u32 2, %s21
      %p349 = scmp.lt.s32.totalorder %s348, 3
      %s350 = scalar_select %p349, %s348, 3
      %s351 = smul.addr %s350, 8
      %s352 = smul.addr %s351, 8
      %s353 = scalar_lea.vmem %s10, %s352
      %s354 = smul.u32 2, %s21
      %p355 = scmp.lt.s32.totalorder %s354, 3
      %s356 = scalar_select %p355, %s354, 3
      %s357 = smul.addr %s356, 8
      %s358 = smul.addr %s357, 8
      %s359 = scalar_lea.vmem %s0, %s358
      %s360 = smul.u32 2, %s21
      %s361 = smul.u32 2, %s21
      %p362 = scmp.lt.s32.totalorder %s361, 3
      %s363 = scalar_select %p362, %s361, 3
      %s364 = smul.addr %s363, 8
      %s365 = smul.addr %s364, 8
      %s366 = scalar_lea.vmem %s10, %s365
      %s367 = smul.u32 2, %s21
      %v369 = vld [vmem:[%s359] sm:$0xff]
      %v370 = vld [vmem:[%s359 + $0x8] sm:$0xff]
      %v371 = vld [vmem:[%s359 + $0x10] sm:$0xff]
      %v372 = vld [vmem:[%s359 + $0x18] sm:$0xff]
      %v373 = vld [vmem:[%s359 + $0x20] sm:$0xff]
      %v374 = vld [vmem:[%s359 + $0x28] sm:$0xff]
      %v375 = vld [vmem:[%s359 + $0x30] sm:$0xff]
      %v376 = vld [vmem:[%s359 + $0x38] sm:$0xff]
      %v377 = vld [vmem:[%s359 + $0x40] sm:$0xff]
      %v378 = vld [vmem:[%s359 + $0x48] sm:$0xff]
      %v379 = vld [vmem:[%s359 + $0x50] sm:$0xff]
      %v380 = vld [vmem:[%s359 + $0x58] sm:$0xff]
      %v381 = vld [vmem:[%s359 + $0x60] sm:$0xff]
      %v382 = vld [vmem:[%s359 + $0x68] sm:$0xff]
      %v383 = vld [vmem:[%s359 + $0x70] sm:$0xff]
      %v384 = vld [vmem:[%s359 + $0x78] sm:$0xff]
      %v385 = vmul.f32 %v369, %v369
      %v386 = vmul.f32 %v370, %v370
      %v387 = vmul.f32 %v371, %v371
      %v388 = vmul.f32 %v372, %v372
      %v389 = vmul.f32 %v373, %v373
      %v390 = vmul.f32 %v374, %v374
      %v391 = vmul.f32 %v375, %v375
      %v392 = vmul.f32 %v376, %v376
      %v393 = vmul.f32 %v377, %v377
      %v394 = vmul.f32 %v378, %v378
      %v395 = vmul.f32 %v379, %v379
      %v396 = vmul.f32 %v380, %v380
      %v397 = vmul.f32 %v381, %v381
      %v398 = vmul.f32 %v382, %v382
      %v399 = vmul.f32 %v383, %v383
      %v400 = vmul.f32 %v384, %v384
      %vm401 = vcmask 130048
      %v402 = vsel %vm401, %v385, 0.0
      %403 = vadd.xlane.f32.xlu0 %v402
      %v404 = vpop.xlane.xlu0 %403
      %v405 = vsel %vm401, %v386, 0.0
      %406 = vadd.xlane.f32.xlu0 %v405
      %v407 = vpop.xlane.xlu0 %406
      %v408 = vsel %vm401, %v387, 0.0
      %409 = vadd.xlane.f32.xlu0 %v408
      %v410 = vpop.xlane.xlu0 %409
      %v411 = vsel %vm401, %v388, 0.0
      %412 = vadd.xlane.f32.xlu0 %v411
      %v413 = vpop.xlane.xlu0 %412
      %v414 = vsel %vm401, %v389, 0.0
      %415 = vadd.xlane.f32.xlu0 %v414
      %v416 = vpop.xlane.xlu0 %415
      %v417 = vsel %vm401, %v390, 0.0
      %418 = vadd.xlane.f32.xlu0 %v417
      %v419 = vpop.xlane.xlu0 %418
      %v420 = vsel %vm401, %v391, 0.0
      %421 = vadd.xlane.f32.xlu0 %v420
      %v422 = vpop.xlane.xlu0 %421
      %v423 = vsel %vm401, %v392, 0.0
      %424 = vadd.xlane.f32.xlu0 %v423
      %v425 = vpop.xlane.xlu0 %424
      %v426 = vsel %vm401, %v393, 0.0
      %427 = vadd.xlane.f32.xlu0 %v426
      %v428 = vpop.xlane.xlu0 %427
      %v429 = vsel %vm401, %v394, 0.0
      %430 = vadd.xlane.f32.xlu0 %v429
      %v431 = vpop.xlane.xlu0 %430
      %v432 = vsel %vm401, %v395, 0.0
      %433 = vadd.xlane.f32.xlu0 %v432
      %v434 = vpop.xlane.xlu0 %433
      %v435 = vsel %vm401, %v396, 0.0
      %436 = vadd.xlane.f32.xlu0 %v435
      %v437 = vpop.xlane.xlu0 %436
      %v438 = vsel %vm401, %v397, 0.0
      %439 = vadd.xlane.f32.xlu0 %v438
      %v440 = vpop.xlane.xlu0 %439
      %v441 = vsel %vm401, %v398, 0.0
      %442 = vadd.xlane.f32.xlu0 %v441
      %v443 = vpop.xlane.xlu0 %442
      %v444 = vsel %vm401, %v399, 0.0
      %445 = vadd.xlane.f32.xlu0 %v444
      %v446 = vpop.xlane.xlu0 %445
      %v447 = vsel %vm401, %v400, 0.0
      %448 = vadd.xlane.f32.xlu0 %v447
      %v449 = vpop.xlane.xlu0 %448
      %v450 = vmax.f32 %v404, 1e-24
      %v451 = vmax.f32 %v407, 1e-24
      %v452 = vmax.f32 %v410, 1e-24
      %v453 = vmax.f32 %v413, 1e-24
      %v454 = vmax.f32 %v416, 1e-24
      %v455 = vmax.f32 %v419, 1e-24
      %v456 = vmax.f32 %v422, 1e-24
      %v457 = vmax.f32 %v425, 1e-24
      %v458 = vmax.f32 %v428, 1e-24
      %v459 = vmax.f32 %v431, 1e-24
      %v460 = vmax.f32 %v434, 1e-24
      %v461 = vmax.f32 %v437, 1e-24
      %v462 = vmax.f32 %v440, 1e-24
      %v463 = vmax.f32 %v443, 1e-24
      %v464 = vmax.f32 %v446, 1e-24
      %v465 = vmax.f32 %v449, 1e-24
      %v466 = vrsqrt.pop %v450
      %v467 = vrsqrt.pop %v451
      %v468 = vrsqrt.pop %v452
      %v469 = vrsqrt.pop %v453
      %v470 = vrsqrt.pop %v454
      %v471 = vrsqrt.pop %v455
      %v472 = vrsqrt.pop %v456
      %v473 = vrsqrt.pop %v457
      %v474 = vrsqrt.pop %v458
      %v475 = vrsqrt.pop %v459
      %v476 = vrsqrt.pop %v460
      %v477 = vrsqrt.pop %v461
      %v478 = vrsqrt.pop %v462
      %v479 = vrsqrt.pop %v463
      %v480 = vrsqrt.pop %v464
      %v481 = vrsqrt.pop %v465
      %v482 = vmul.f32 %v369, %v466
      %v483 = vmul.f32 %v370, %v467
      %v484 = vmul.f32 %v371, %v468
      %v485 = vmul.f32 %v372, %v469
      %v486 = vmul.f32 %v373, %v470
      %v487 = vmul.f32 %v374, %v471
      %v488 = vmul.f32 %v375, %v472
      %v489 = vmul.f32 %v376, %v473
      %v490 = vmul.f32 %v377, %v474
      %v491 = vmul.f32 %v378, %v475
      %v492 = vmul.f32 %v379, %v476
      %v493 = vmul.f32 %v380, %v477
      %v494 = vmul.f32 %v381, %v478
      %v495 = vmul.f32 %v382, %v479
      %v496 = vmul.f32 %v383, %v480
      %v497 = vmul.f32 %v384, %v481
      %v498 = vld [vmem:[%s1] sm:$0x1]
      %v500 = vlaneseq
      %v501 = vshrl.u32 %v500, 7
      %v502 = vsub.s32 0, %v501
      %v503 = vrot.slane %v498, %v502
      %v505 = vmul.f32 %v482, %v503
      %v506 = vmul.f32 %v483, %v503
      %v507 = vmul.f32 %v484, %v503
      %v508 = vmul.f32 %v485, %v503
      %v509 = vmul.f32 %v486, %v503
      %v510 = vmul.f32 %v487, %v503
      %v511 = vmul.f32 %v488, %v503
      %v512 = vmul.f32 %v489, %v503
      %v513 = vmul.f32 %v490, %v503
      %v514 = vmul.f32 %v491, %v503
      %v515 = vmul.f32 %v492, %v503
      %v516 = vmul.f32 %v493, %v503
      %v517 = vmul.f32 %v494, %v503
      %v518 = vmul.f32 %v495, %v503
      %v519 = vmul.f32 %v496, %v503
      %v520 = vmul.f32 %v497, %v503
      %v521 = vpack.c.bf16 %v506, %v505
      %v522 = vpack.c.bf16 %v508, %v507
      %v523 = vpack.c.bf16 %v510, %v509
      %v524 = vpack.c.bf16 %v512, %v511
      %v525 = vpack.c.bf16 %v514, %v513
      %v526 = vpack.c.bf16 %v516, %v515
      %v527 = vpack.c.bf16 %v518, %v517
      %v528 = vpack.c.bf16 %v520, %v519
      %v529 = vld [vmem:[%s2] sm:$0xf]
      %v530 = vld [vmem:[%s2 + $0x4] sm:$0xf]
      %v531 = vld [vmem:[%s5] sm:$0x1]
      %v533 = vlaneseq
      %v534 = vshrl.u32 %v533, 7
      %v535 = vsub.s32 0, %v534
      %v536 = vrot.slane %v531, %v535
      %v540 = vunpack.c.l.b16 %v529
      %v541 = vunpack.c.l.b16 %v530
      %v542 = vpack.c.b16 %v541, %v540
      %v545 = vsel %vm401, %v521, 0
      %v548 = vsel %vm401, %v522, 0
      %v551 = vsel %vm401, %v523, 0
      %v554 = vsel %vm401, %v524, 0
      %v557 = vsel %vm401, %v525, 0
      %v560 = vsel %vm401, %v526, 0
      %v563 = vsel %vm401, %v527, 0
      %v566 = vsel %vm401, %v528, 0
      %568 = vmatprep.subr.bf16.mxu0 0
      %569 = vmatpush1.bf16.msra.mxu0 0
      %570 = vmatprep.subr.bf16.mxu0 0
      %571 = vmatpush1.bf16.msra.mxu0 0
      %572 = vmatprep.subr.bf16.mxu0 0
      %573 = vmatpush1.bf16.msra.mxu0 0
      %574 = vmatprep.subr.bf16.mxu0 0
      %575 = vmatpush1.bf16.msra.mxu0 0
      %576 = vmatprep.subr.bf16.mxu0 0
      %577 = vmatpush1.bf16.msra.mxu0 0
      %578 = vmatprep.subr.bf16.mxu0 0
      %579 = vmatpush1.bf16.msra.mxu0 0
      %580 = vmatprep.subr.bf16.mxu0 0
      %581 = vmatpush1.bf16.msra.mxu0 0
      %582 = vmatprep.subr.bf16.mxu0 0
      %583 = vmatpush1.bf16.msra.mxu0 %v542
      %584 = vmatprep.subr.bf16.mxu0 0
      %585 = vmatpush2.bf16.msra.mxu0 0
      %586 = vmatprep.subr.bf16.mxu0 0
      %587 = vmatpush2.bf16.msra.mxu0 0
      %588 = vmatprep.subr.bf16.mxu0 0
      %589 = vmatpush2.bf16.msra.mxu0 0
      %590 = vmatprep.subr.bf16.mxu0 0
      %591 = vmatpush2.bf16.msra.mxu0 0
      %592 = vmatprep.subr.bf16.mxu0 0
      %593 = vmatpush2.bf16.msra.mxu0 0
      %594 = vmatprep.subr.bf16.mxu0 0
      %595 = vmatpush2.bf16.msra.mxu0 0
      %596 = vmatprep.subr.bf16.mxu0 0
      %597 = vmatpush2.bf16.msra.mxu0 0
      %598 = vmatprep.subr.bf16.mxu0 0
      %599 = vmatpush2.bf16.msra.mxu0 0
      %600 = vmatprep.mubr.bf16.mxu0 0
      %601 = vmatmul.mubr.bf16.gmra.mxu0 %v545
      %v602 = vpop.f32.mrf.mxu0
      %v603 = vadd.f32 %v536, %v602
      %v604 = vpop.f32.mrf.mxu0
      %v605 = vpop.f32.mrf.mxu0
      %v606 = vadd.f32 %v536, %v605
      %v607 = vpop.f32.mrf.mxu0
      %608 = vmatprep.mubr.bf16.mxu0 0
      %609 = vmatmul.mubr.bf16.gmra.mxu0 %v548
      %v610 = vpop.f32.mrf.mxu0
      %v611 = vadd.f32 %v536, %v610
      %v612 = vpop.f32.mrf.mxu0
      %v613 = vpop.f32.mrf.mxu0
      %v614 = vadd.f32 %v536, %v613
      %v615 = vpop.f32.mrf.mxu0
      %616 = vmatprep.mubr.bf16.mxu0 0
      %617 = vmatmul.mubr.bf16.gmra.mxu0 %v551
      %v618 = vpop.f32.mrf.mxu0
      %v619 = vadd.f32 %v536, %v618
      %v620 = vpop.f32.mrf.mxu0
      %v621 = vpop.f32.mrf.mxu0
      %v622 = vadd.f32 %v536, %v621
      %v623 = vpop.f32.mrf.mxu0
      %624 = vmatprep.mubr.bf16.mxu0 0
      %625 = vmatmul.mubr.bf16.gmra.mxu0 %v554
      %v626 = vpop.f32.mrf.mxu0
      %v627 = vadd.f32 %v536, %v626
      %v628 = vpop.f32.mrf.mxu0
      %v629 = vpop.f32.mrf.mxu0
      %v630 = vadd.f32 %v536, %v629
      %v631 = vpop.f32.mrf.mxu0
      %632 = vmatprep.mubr.bf16.mxu0 0
      %633 = vmatmul.mubr.bf16.gmra.mxu0 %v557
      %v634 = vpop.f32.mrf.mxu0
      %v635 = vadd.f32 %v536, %v634
      %v636 = vpop.f32.mrf.mxu0
      %v637 = vpop.f32.mrf.mxu0
      %v638 = vadd.f32 %v536, %v637
      %v639 = vpop.f32.mrf.mxu0
      %640 = vmatprep.mubr.bf16.mxu0 0
      %641 = vmatmul.mubr.bf16.gmra.mxu0 %v560
      %v642 = vpop.f32.mrf.mxu0
      %v643 = vadd.f32 %v536, %v642
      %v644 = vpop.f32.mrf.mxu0
      %v645 = vpop.f32.mrf.mxu0
      %v646 = vadd.f32 %v536, %v645
      %v647 = vpop.f32.mrf.mxu0
      %648 = vmatprep.mubr.bf16.mxu0 0
      %649 = vmatmul.mubr.bf16.gmra.mxu0 %v563
      %v650 = vpop.f32.mrf.mxu0
      %v651 = vadd.f32 %v536, %v650
      %v652 = vpop.f32.mrf.mxu0
      %v653 = vpop.f32.mrf.mxu0
      %v654 = vadd.f32 %v536, %v653
      %v655 = vpop.f32.mrf.mxu0
      %656 = vmatprep.mubr.bf16.mxu0 0
      %657 = vmatmul.mubr.bf16.gmra.mxu0 %v566
      %v658 = vpop.f32.mrf.mxu0
      %v659 = vadd.f32 %v536, %v658
      %v660 = vpop.f32.mrf.mxu0
      %v661 = vpop.f32.mrf.mxu0
      %v662 = vadd.f32 %v536, %v661
      %v663 = vpop.f32.mrf.mxu0
      %664 = vdwg.mxu0
      %v665 = vld [vmem:[%s3] sm:$0xf]
      %v666 = vld [vmem:[%s3 + $0x4] sm:$0xf]
      %v667 = vld [vmem:[%s6] sm:$0x1]
      %v669 = vlaneseq
      %v670 = vshrl.u32 %v669, 7
      %v671 = vsub.s32 0, %v670
      %v672 = vrot.slane %v667, %v671
      %v676 = vunpack.c.l.b16 %v665
      %v677 = vunpack.c.l.b16 %v666
      %v678 = vpack.c.b16 %v677, %v676
      %680 = vmatprep.subr.bf16.mxu0 0
      %681 = vmatpush1.bf16.msra.mxu0 0
      %682 = vmatprep.subr.bf16.mxu0 0
      %683 = vmatpush1.bf16.msra.mxu0 0
      %684 = vmatprep.subr.bf16.mxu0 0
      %685 = vmatpush1.bf16.msra.mxu0 0
      %686 = vmatprep.subr.bf16.mxu0 0
      %687 = vmatpush1.bf16.msra.mxu0 0
      %688 = vmatprep.subr.bf16.mxu0 0
      %689 = vmatpush1.bf16.msra.mxu0 0
      %690 = vmatprep.subr.bf16.mxu0 0
      %691 = vmatpush1.bf16.msra.mxu0 0
      %692 = vmatprep.subr.bf16.mxu0 0
      %693 = vmatpush1.bf16.msra.mxu0 0
      %694 = vmatprep.subr.bf16.mxu0 0
      %695 = vmatpush1.bf16.msra.mxu0 %v678
      %696 = vmatprep.subr.bf16.mxu0 0
      %697 = vmatpush2.bf16.msra.mxu0 0
      %698 = vmatprep.subr.bf16.mxu0 0
      %699 = vmatpush2.bf16.msra.mxu0 0
      %700 = vmatprep.subr.bf16.mxu0 0
      %701 = vmatpush2.bf16.msra.mxu0 0
      %702 = vmatprep.subr.bf16.mxu0 0
      %703 = vmatpush2.bf16.msra.mxu0 0
      %704 = vmatprep.subr.bf16.mxu0 0
      %705 = vmatpush2.bf16.msra.mxu0 0
      %706 = vmatprep.subr.bf16.mxu0 0
      %707 = vmatpush2.bf16.msra.mxu0 0
      %708 = vmatprep.subr.bf16.mxu0 0
      %709 = vmatpush2.bf16.msra.mxu0 0
      %710 = vmatprep.subr.bf16.mxu0 0
      %711 = vmatpush2.bf16.msra.mxu0 0
      %712 = vmatprep.mubr.bf16.mxu0 0
      %713 = vmatmul.mubr.bf16.gmra.mxu0 %v545
      %v714 = vpop.f32.mrf.mxu0
      %v715 = vadd.f32 %v672, %v714
      %v716 = vpop.f32.mrf.mxu0
      %v717 = vpop.f32.mrf.mxu0
      %v718 = vadd.f32 %v672, %v717
      %v719 = vpop.f32.mrf.mxu0
      %720 = vmatprep.mubr.bf16.mxu0 0
      %721 = vmatmul.mubr.bf16.gmra.mxu0 %v548
      %v722 = vpop.f32.mrf.mxu0
      %v723 = vadd.f32 %v672, %v722
      %v724 = vpop.f32.mrf.mxu0
      %v725 = vpop.f32.mrf.mxu0
      %v726 = vadd.f32 %v672, %v725
      %v727 = vpop.f32.mrf.mxu0
      %728 = vmatprep.mubr.bf16.mxu0 0
      %729 = vmatmul.mubr.bf16.gmra.mxu0 %v551
      %v730 = vpop.f32.mrf.mxu0
      %v731 = vadd.f32 %v672, %v730
      %v732 = vpop.f32.mrf.mxu0
      %v733 = vpop.f32.mrf.mxu0
      %v734 = vadd.f32 %v672, %v733
      %v735 = vpop.f32.mrf.mxu0
      %736 = vmatprep.mubr.bf16.mxu0 0
      %737 = vmatmul.mubr.bf16.gmra.mxu0 %v554
      %v738 = vpop.f32.mrf.mxu0
      %v739 = vadd.f32 %v672, %v738
      %v740 = vpop.f32.mrf.mxu0
      %v741 = vpop.f32.mrf.mxu0
      %v742 = vadd.f32 %v672, %v741
      %v743 = vpop.f32.mrf.mxu0
      %744 = vmatprep.mubr.bf16.mxu0 0
      %745 = vmatmul.mubr.bf16.gmra.mxu0 %v557
      %v746 = vpop.f32.mrf.mxu0
      %v747 = vadd.f32 %v672, %v746
      %v748 = vpop.f32.mrf.mxu0
      %v749 = vpop.f32.mrf.mxu0
      %v750 = vadd.f32 %v672, %v749
      %v751 = vpop.f32.mrf.mxu0
      %752 = vmatprep.mubr.bf16.mxu0 0
      %753 = vmatmul.mubr.bf16.gmra.mxu0 %v560
      %v754 = vpop.f32.mrf.mxu0
      %v755 = vadd.f32 %v672, %v754
      %v756 = vpop.f32.mrf.mxu0
      %v757 = vpop.f32.mrf.mxu0
      %v758 = vadd.f32 %v672, %v757
      %v759 = vpop.f32.mrf.mxu0
      %760 = vmatprep.mubr.bf16.mxu0 0
      %761 = vmatmul.mubr.bf16.gmra.mxu0 %v563
      %v762 = vpop.f32.mrf.mxu0
      %v763 = vadd.f32 %v672, %v762
      %v764 = vpop.f32.mrf.mxu0
      %v765 = vpop.f32.mrf.mxu0
      %v766 = vadd.f32 %v672, %v765
      %v767 = vpop.f32.mrf.mxu0
      %768 = vmatprep.mubr.bf16.mxu0 0
      %769 = vmatmul.mubr.bf16.gmra.mxu0 %v566
      %v770 = vpop.f32.mrf.mxu0
      %v771 = vadd.f32 %v672, %v770
      %v772 = vpop.f32.mrf.mxu0
      %v773 = vpop.f32.mrf.mxu0
      %v774 = vadd.f32 %v672, %v773
      %v775 = vpop.f32.mrf.mxu0
      %776 = vdwg.mxu0
      %v777 = vld [vmem:[%s4] sm:$0xf]
      %v778 = vld [vmem:[%s4 + $0x4] sm:$0xf]
      %v779 = vld [vmem:[%s7] sm:$0x1]
      %v781 = vlaneseq
      %v782 = vshrl.u32 %v781, 7
      %v783 = vsub.s32 0, %v782
      %v784 = vrot.slane %v779, %v783
      %v788 = vunpack.c.l.b16 %v777
      %v789 = vunpack.c.l.b16 %v778
      %v790 = vpack.c.b16 %v789, %v788
      %792 = vmatprep.subr.bf16.mxu0 0
      %793 = vmatpush1.bf16.msra.mxu0 0
      %794 = vmatprep.subr.bf16.mxu0 0
      %795 = vmatpush1.bf16.msra.mxu0 0
      %796 = vmatprep.subr.bf16.mxu0 0
      %797 = vmatpush1.bf16.msra.mxu0 0
      %798 = vmatprep.subr.bf16.mxu0 0
      %799 = vmatpush1.bf16.msra.mxu0 0
      %800 = vmatprep.subr.bf16.mxu0 0
      %801 = vmatpush1.bf16.msra.mxu0 0
      %802 = vmatprep.subr.bf16.mxu0 0
      %803 = vmatpush1.bf16.msra.mxu0 0
      %804 = vmatprep.subr.bf16.mxu0 0
      %805 = vmatpush1.bf16.msra.mxu0 0
      %806 = vmatprep.subr.bf16.mxu0 0
      %807 = vmatpush1.bf16.msra.mxu0 %v790
      %808 = vmatprep.subr.bf16.mxu0 0
      %809 = vmatpush2.bf16.msra.mxu0 0
      %810 = vmatprep.subr.bf16.mxu0 0
      %811 = vmatpush2.bf16.msra.mxu0 0
      %812 = vmatprep.subr.bf16.mxu0 0
      %813 = vmatpush2.bf16.msra.mxu0 0
      %814 = vmatprep.subr.bf16.mxu0 0
      %815 = vmatpush2.bf16.msra.mxu0 0
      %816 = vmatprep.subr.bf16.mxu0 0
      %817 = vmatpush2.bf16.msra.mxu0 0
      %818 = vmatprep.subr.bf16.mxu0 0
      %819 = vmatpush2.bf16.msra.mxu0 0
      %820 = vmatprep.subr.bf16.mxu0 0
      %821 = vmatpush2.bf16.msra.mxu0 0
      %822 = vmatprep.subr.bf16.mxu0 0
      %823 = vmatpush2.bf16.msra.mxu0 0
      %824 = vmatprep.mubr.bf16.mxu0 0
      %825 = vmatmul.mubr.bf16.gmra.mxu0 %v545
      %v826 = vpop.f32.mrf.mxu0
      %v827 = vadd.f32 %v784, %v826
      %v828 = vpop.f32.mrf.mxu0
      %v829 = vpop.f32.mrf.mxu0
      %v830 = vadd.f32 %v784, %v829
      %v831 = vpop.f32.mrf.mxu0
      %832 = vmatprep.mubr.bf16.mxu0 0
      %833 = vmatmul.mubr.bf16.gmra.mxu0 %v548
      %v834 = vpop.f32.mrf.mxu0
      %v835 = vadd.f32 %v784, %v834
      %v836 = vpop.f32.mrf.mxu0
      %v837 = vpop.f32.mrf.mxu0
      %v838 = vadd.f32 %v784, %v837
      %v839 = vpop.f32.mrf.mxu0
      %840 = vmatprep.mubr.bf16.mxu0 0
      %841 = vmatmul.mubr.bf16.gmra.mxu0 %v551
      %v842 = vpop.f32.mrf.mxu0
      %v843 = vadd.f32 %v784, %v842
      %v844 = vpop.f32.mrf.mxu0
      %v845 = vpop.f32.mrf.mxu0
      %v846 = vadd.f32 %v784, %v845
      %v847 = vpop.f32.mrf.mxu0
      %848 = vmatprep.mubr.bf16.mxu0 0
      %849 = vmatmul.mubr.bf16.gmra.mxu0 %v554
      %v850 = vpop.f32.mrf.mxu0
      %v851 = vadd.f32 %v784, %v850
      %v852 = vpop.f32.mrf.mxu0
      %v853 = vpop.f32.mrf.mxu0
      %v854 = vadd.f32 %v784, %v853
      %v855 = vpop.f32.mrf.mxu0
      %856 = vmatprep.mubr.bf16.mxu0 0
      %857 = vmatmul.mubr.bf16.gmra.mxu0 %v557
      %v858 = vpop.f32.mrf.mxu0
      %v859 = vadd.f32 %v784, %v858
      %v860 = vpop.f32.mrf.mxu0
      %v861 = vpop.f32.mrf.mxu0
      %v862 = vadd.f32 %v784, %v861
      %v863 = vpop.f32.mrf.mxu0
      %864 = vmatprep.mubr.bf16.mxu0 0
      %865 = vmatmul.mubr.bf16.gmra.mxu0 %v560
      %v866 = vpop.f32.mrf.mxu0
      %v867 = vadd.f32 %v784, %v866
      %v868 = vpop.f32.mrf.mxu0
      %v869 = vpop.f32.mrf.mxu0
      %v870 = vadd.f32 %v784, %v869
      %v871 = vpop.f32.mrf.mxu0
      %872 = vmatprep.mubr.bf16.mxu0 0
      %873 = vmatmul.mubr.bf16.gmra.mxu0 %v563
      %v874 = vpop.f32.mrf.mxu0
      %v875 = vadd.f32 %v784, %v874
      %v876 = vpop.f32.mrf.mxu0
      %v877 = vpop.f32.mrf.mxu0
      %v878 = vadd.f32 %v784, %v877
      %v879 = vpop.f32.mrf.mxu0
      %880 = vmatprep.mubr.bf16.mxu0 0
      %881 = vmatmul.mubr.bf16.gmra.mxu0 %v566
      %v882 = vpop.f32.mrf.mxu0
      %v883 = vadd.f32 %v784, %v882
      %v884 = vpop.f32.mrf.mxu0
      %v885 = vpop.f32.mrf.mxu0
      %v886 = vadd.f32 %v784, %v885
      %v887 = vpop.f32.mrf.mxu0
      %888 = vdwg.mxu0
      %v889 = vpack.c.bf16 %v606, %v603
      %v890 = vpack.c.bf16 %v614, %v611
      %v891 = vpack.c.bf16 %v622, %v619
      %v892 = vpack.c.bf16 %v630, %v627
      %v893 = vpack.c.bf16 %v638, %v635
      %v894 = vpack.c.bf16 %v646, %v643
      %v895 = vpack.c.bf16 %v654, %v651
      %v896 = vpack.c.bf16 %v662, %v659
      %v897 = vpack.c.bf16 %v718, %v715
      %v898 = vpack.c.bf16 %v726, %v723
      %v899 = vpack.c.bf16 %v734, %v731
      %v900 = vpack.c.bf16 %v742, %v739
      %v901 = vpack.c.bf16 %v750, %v747
      %v902 = vpack.c.bf16 %v758, %v755
      %v903 = vpack.c.bf16 %v766, %v763
      %v904 = vpack.c.bf16 %v774, %v771
      %v905 = vpack.c.bf16 %v830, %v827
      %v906 = vpack.c.bf16 %v838, %v835
      %v907 = vpack.c.bf16 %v846, %v843
      %v908 = vpack.c.bf16 %v854, %v851
      %v909 = vpack.c.bf16 %v862, %v859
      %v910 = vpack.c.bf16 %v870, %v867
      %v911 = vpack.c.bf16 %v878, %v875
      %v912 = vpack.c.bf16 %v886, %v883
      %v914 = vsel %vm401, %v889, 0
      %v917 = vsel %vm401, %v890, 0
      %v920 = vsel %vm401, %v891, 0
      %v923 = vsel %vm401, %v892, 0
      %v926 = vsel %vm401, %v897, 0
      %v929 = vsel %vm401, %v898, 0
      %v932 = vsel %vm401, %v899, 0
      %v935 = vsel %vm401, %v900, 0
      %937 = vmatprep.subr.bf16.mxu0 0
      %938 = vmatpush1.bf16.xpose.msra.mxu0 0
      %939 = vmatprep.subr.bf16.mxu0 0
      %940 = vmatpush1.bf16.xpose.msra.mxu0 0
      %941 = vmatprep.subr.bf16.mxu0 0
      %942 = vmatpush1.bf16.xpose.msra.mxu0 0
      %943 = vmatprep.subr.bf16.mxu0 0
      %944 = vmatpush1.bf16.xpose.msra.mxu0 0
      %945 = vmatprep.subr.bf16.mxu0 0
      %946 = vmatpush1.bf16.xpose.msra.mxu0 %v935
      %947 = vmatprep.subr.bf16.mxu0 0
      %948 = vmatpush1.bf16.xpose.msra.mxu0 %v932
      %949 = vmatprep.subr.bf16.mxu0 0
      %950 = vmatpush1.bf16.xpose.msra.mxu0 %v929
      %951 = vmatprep.subr.bf16.mxu0 0
      %952 = vmatpush1.bf16.xpose.msra.mxu0 %v926
      %953 = vmatprep.subr.bf16.mxu0 0
      %954 = vmatpush2.bf16.xpose.msra.mxu0 0
      %955 = vmatprep.subr.bf16.mxu0 0
      %956 = vmatpush2.bf16.xpose.msra.mxu0 0
      %957 = vmatprep.subr.bf16.mxu0 0
      %958 = vmatpush2.bf16.xpose.msra.mxu0 0
      %959 = vmatprep.subr.bf16.mxu0 0
      %960 = vmatpush2.bf16.xpose.msra.mxu0 0
      %961 = vmatprep.subr.bf16.mxu0 0
      %962 = vmatpush2.bf16.xpose.msra.mxu0 0
      %963 = vmatprep.subr.bf16.mxu0 0
      %964 = vmatpush2.bf16.xpose.msra.mxu0 0
      %965 = vmatprep.subr.bf16.mxu0 0
      %966 = vmatpush2.bf16.xpose.msra.mxu0 0
      %967 = vmatprep.subr.bf16.mxu0 0
      %968 = vmatpush2.bf16.xpose.msra.mxu0 0
      %969 = vmatprep.mubr.bf16.mxu0 0
      %970 = vmatmul.mubr.bf16.gmra.mxu0 %v914
      %v971 = vpop.f32.mrf.mxu0
      %v972 = vadd.f32 0.0, %v971
      %v973 = vpop.f32.mrf.mxu0
      %v974 = vpop.f32.mrf.mxu0
      %v975 = vadd.f32 0.0, %v974
      %v976 = vpop.f32.mrf.mxu0
      %977 = vmatprep.mubr.bf16.mxu0 0
      %978 = vmatmul.mubr.bf16.gmra.mxu0 %v917
      %v979 = vpop.f32.mrf.mxu0
      %v980 = vadd.f32 0.0, %v979
      %v981 = vpop.f32.mrf.mxu0
      %v982 = vpop.f32.mrf.mxu0
      %v983 = vadd.f32 0.0, %v982
      %v984 = vpop.f32.mrf.mxu0
      %985 = vmatprep.mubr.bf16.mxu0 0
      %986 = vmatmul.mubr.bf16.gmra.mxu0 %v920
      %v987 = vpop.f32.mrf.mxu0
      %v988 = vadd.f32 0.0, %v987
      %v989 = vpop.f32.mrf.mxu0
      %v990 = vpop.f32.mrf.mxu0
      %v991 = vadd.f32 0.0, %v990
      %v992 = vpop.f32.mrf.mxu0
      %993 = vmatprep.mubr.bf16.mxu0 0
      %994 = vmatmul.mubr.bf16.gmra.mxu0 %v923
      %v995 = vpop.f32.mrf.mxu0
      %v996 = vadd.f32 0.0, %v995
      %v997 = vpop.f32.mrf.mxu0
      %v998 = vpop.f32.mrf.mxu0
      %v999 = vadd.f32 0.0, %v998
      %v1000 = vpop.f32.mrf.mxu0
      %1001 = vdwg.mxu0
      %v1003 = vsel %vm401, %v893, 0
      %v1006 = vsel %vm401, %v894, 0
      %v1009 = vsel %vm401, %v895, 0
      %v1012 = vsel %vm401, %v896, 0
      %v1015 = vsel %vm401, %v901, 0
      %v1018 = vsel %vm401, %v902, 0
      %v1021 = vsel %vm401, %v903, 0
      %v1024 = vsel %vm401, %v904, 0
      %1026 = vmatprep.subr.bf16.mxu0 0
      %1027 = vmatpush1.bf16.xpose.msra.mxu0 0
      %1028 = vmatprep.subr.bf16.mxu0 0
      %1029 = vmatpush1.bf16.xpose.msra.mxu0 0
      %1030 = vmatprep.subr.bf16.mxu0 0
      %1031 = vmatpush1.bf16.xpose.msra.mxu0 0
      %1032 = vmatprep.subr.bf16.mxu0 0
      %1033 = vmatpush1.bf16.xpose.msra.mxu0 0
      %1034 = vmatprep.subr.bf16.mxu0 0
      %1035 = vmatpush1.bf16.xpose.msra.mxu0 %v1024
      %1036 = vmatprep.subr.bf16.mxu0 0
      %1037 = vmatpush1.bf16.xpose.msra.mxu0 %v1021
      %1038 = vmatprep.subr.bf16.mxu0 0
      %1039 = vmatpush1.bf16.xpose.msra.mxu0 %v1018
      %1040 = vmatprep.subr.bf16.mxu0 0
      %1041 = vmatpush1.bf16.xpose.msra.mxu0 %v1015
      %1042 = vmatprep.subr.bf16.mxu0 0
      %1043 = vmatpush2.bf16.xpose.msra.mxu0 0
      %1044 = vmatprep.subr.bf16.mxu0 0
      %1045 = vmatpush2.bf16.xpose.msra.mxu0 0
      %1046 = vmatprep.subr.bf16.mxu0 0
      %1047 = vmatpush2.bf16.xpose.msra.mxu0 0
      %1048 = vmatprep.subr.bf16.mxu0 0
      %1049 = vmatpush2.bf16.xpose.msra.mxu0 0
      %1050 = vmatprep.subr.bf16.mxu0 0
      %1051 = vmatpush2.bf16.xpose.msra.mxu0 0
      %1052 = vmatprep.subr.bf16.mxu0 0
      %1053 = vmatpush2.bf16.xpose.msra.mxu0 0
      %1054 = vmatprep.subr.bf16.mxu0 0
      %1055 = vmatpush2.bf16.xpose.msra.mxu0 0
      %1056 = vmatprep.subr.bf16.mxu0 0
      %1057 = vmatpush2.bf16.xpose.msra.mxu0 0
      %1058 = vmatprep.mubr.bf16.mxu0 0
      %1059 = vmatmul.mubr.bf16.gmra.mxu0 %v1003
      %v1060 = vpop.f32.mrf.mxu0
      %v1061 = vadd.f32 0.0, %v1060
      %v1062 = vpop.f32.mrf.mxu0
      %v1063 = vpop.f32.mrf.mxu0
      %v1064 = vadd.f32 0.0, %v1063
      %v1065 = vpop.f32.mrf.mxu0
      %1066 = vmatprep.mubr.bf16.mxu0 0
      %1067 = vmatmul.mubr.bf16.gmra.mxu0 %v1006
      %v1068 = vpop.f32.mrf.mxu0
      %v1069 = vadd.f32 0.0, %v1068
      %v1070 = vpop.f32.mrf.mxu0
      %v1071 = vpop.f32.mrf.mxu0
      %v1072 = vadd.f32 0.0, %v1071
      %v1073 = vpop.f32.mrf.mxu0
      %1074 = vmatprep.mubr.bf16.mxu0 0
      %1075 = vmatmul.mubr.bf16.gmra.mxu0 %v1009
      %v1076 = vpop.f32.mrf.mxu0
      %v1077 = vadd.f32 0.0, %v1076
      %v1078 = vpop.f32.mrf.mxu0
      %v1079 = vpop.f32.mrf.mxu0
      %v1080 = vadd.f32 0.0, %v1079
      %v1081 = vpop.f32.mrf.mxu0
      %1082 = vmatprep.mubr.bf16.mxu0 0
      %1083 = vmatmul.mubr.bf16.gmra.mxu0 %v1012
      %v1084 = vpop.f32.mrf.mxu0
      %v1085 = vadd.f32 0.0, %v1084
      %v1086 = vpop.f32.mrf.mxu0
      %v1087 = vpop.f32.mrf.mxu0
      %v1088 = vadd.f32 0.0, %v1087
      %v1089 = vpop.f32.mrf.mxu0
      %1090 = vdwg.mxu0
      %vm1091 = vcmask 523264
      %v1092 = vsel %vm1091, %v972, -inf
      %1093 = vmax.xlane.f32.xlu0 %v1092
      %v1094 = vpop.xlane.xlu0 %1093
      %v1095 = vsel %vm1091, %v975, -inf
      %1096 = vmax.xlane.f32.xlu0 %v1095
      %v1097 = vpop.xlane.xlu0 %1096
      %v1098 = vsel %vm1091, %v980, -inf
      %1099 = vmax.xlane.f32.xlu0 %v1098
      %v1100 = vpop.xlane.xlu0 %1099
      %v1101 = vsel %vm1091, %v983, -inf
      %1102 = vmax.xlane.f32.xlu0 %v1101
      %v1103 = vpop.xlane.xlu0 %1102
      %v1104 = vsel %vm1091, %v988, -inf
      %1105 = vmax.xlane.f32.xlu0 %v1104
      %v1106 = vpop.xlane.xlu0 %1105
      %v1107 = vsel %vm1091, %v991, -inf
      %1108 = vmax.xlane.f32.xlu0 %v1107
      %v1109 = vpop.xlane.xlu0 %1108
      %v1110 = vsel %vm1091, %v996, -inf
      %1111 = vmax.xlane.f32.xlu0 %v1110
      %v1112 = vpop.xlane.xlu0 %1111
      %v1113 = vsel %vm1091, %v999, -inf
      %1114 = vmax.xlane.f32.xlu0 %v1113
      %v1115 = vpop.xlane.xlu0 %1114
      %v1116 = vsel %vm1091, %v1061, -inf
      %1117 = vmax.xlane.f32.xlu0 %v1116
      %v1118 = vpop.xlane.xlu0 %1117
      %v1119 = vsel %vm1091, %v1064, -inf
      %1120 = vmax.xlane.f32.xlu0 %v1119
      %v1121 = vpop.xlane.xlu0 %1120
      %v1122 = vsel %vm1091, %v1069, -inf
      %1123 = vmax.xlane.f32.xlu0 %v1122
      %v1124 = vpop.xlane.xlu0 %1123
      %v1125 = vsel %vm1091, %v1072, -inf
      %1126 = vmax.xlane.f32.xlu0 %v1125
      %v1127 = vpop.xlane.xlu0 %1126
      %v1128 = vsel %vm1091, %v1077, -inf
      %1129 = vmax.xlane.f32.xlu0 %v1128
      %v1130 = vpop.xlane.xlu0 %1129
      %v1131 = vsel %vm1091, %v1080, -inf
      %1132 = vmax.xlane.f32.xlu0 %v1131
      %v1133 = vpop.xlane.xlu0 %1132
      %v1134 = vsel %vm1091, %v1085, -inf
      %1135 = vmax.xlane.f32.xlu0 %v1134
      %v1136 = vpop.xlane.xlu0 %1135
      %v1137 = vsel %vm1091, %v1088, -inf
      %1138 = vmax.xlane.f32.xlu0 %v1137
      %v1139 = vpop.xlane.xlu0 %1138
      %v1140 = vsub.f32 %v972, %v1094
      %v1141 = vsub.f32 %v975, %v1097
      %v1142 = vsub.f32 %v980, %v1100
      %v1143 = vsub.f32 %v983, %v1103
      %v1144 = vsub.f32 %v988, %v1106
      %v1145 = vsub.f32 %v991, %v1109
      %v1146 = vsub.f32 %v996, %v1112
      %v1147 = vsub.f32 %v999, %v1115
      %v1148 = vsub.f32 %v1061, %v1118
      %v1149 = vsub.f32 %v1064, %v1121
      %v1150 = vsub.f32 %v1069, %v1124
      %v1151 = vsub.f32 %v1072, %v1127
      %v1152 = vsub.f32 %v1077, %v1130
      %v1153 = vsub.f32 %v1080, %v1133
      %v1154 = vsub.f32 %v1085, %v1136
      %v1155 = vsub.f32 %v1088, %v1139
      %v1156 = vmul.f32 %v1140, 1.442695
      %v1157 = vpow.pop %v1156
      %v1158 = vmul.f32 %v1141, 1.442695
      %v1159 = vpow.pop %v1158
      %v1160 = vmul.f32 %v1142, 1.442695
      %v1161 = vpow.pop %v1160
      %v1162 = vmul.f32 %v1143, 1.442695
      %v1163 = vpow.pop %v1162
      %v1164 = vmul.f32 %v1144, 1.442695
      %v1165 = vpow.pop %v1164
      %v1166 = vmul.f32 %v1145, 1.442695
      %v1167 = vpow.pop %v1166
      %v1168 = vmul.f32 %v1146, 1.442695
      %v1169 = vpow.pop %v1168
      %v1170 = vmul.f32 %v1147, 1.442695
      %v1171 = vpow.pop %v1170
      %v1172 = vmul.f32 %v1148, 1.442695
      %v1173 = vpow.pop %v1172
      %v1174 = vmul.f32 %v1149, 1.442695
      %v1175 = vpow.pop %v1174
      %v1176 = vmul.f32 %v1150, 1.442695
      %v1177 = vpow.pop %v1176
      %v1178 = vmul.f32 %v1151, 1.442695
      %v1179 = vpow.pop %v1178
      %v1180 = vmul.f32 %v1152, 1.442695
      %v1181 = vpow.pop %v1180
      %v1182 = vmul.f32 %v1153, 1.442695
      %v1183 = vpow.pop %v1182
      %v1184 = vmul.f32 %v1154, 1.442695
      %v1185 = vpow.pop %v1184
      %v1186 = vmul.f32 %v1155, 1.442695
      %v1187 = vpow.pop %v1186
      %v1188 = vsel %vm1091, %v1157, 0.0
      %1189 = vadd.xlane.f32.xlu0 %v1188
      %v1190 = vpop.xlane.xlu0 %1189
      %v1191 = vsel %vm1091, %v1159, 0.0
      %1192 = vadd.xlane.f32.xlu0 %v1191
      %v1193 = vpop.xlane.xlu0 %1192
      %v1194 = vsel %vm1091, %v1161, 0.0
      %1195 = vadd.xlane.f32.xlu0 %v1194
      %v1196 = vpop.xlane.xlu0 %1195
      %v1197 = vsel %vm1091, %v1163, 0.0
      %1198 = vadd.xlane.f32.xlu0 %v1197
      %v1199 = vpop.xlane.xlu0 %1198
      %v1200 = vsel %vm1091, %v1165, 0.0
      %1201 = vadd.xlane.f32.xlu0 %v1200
      %v1202 = vpop.xlane.xlu0 %1201
      %v1203 = vsel %vm1091, %v1167, 0.0
      %1204 = vadd.xlane.f32.xlu0 %v1203
      %v1205 = vpop.xlane.xlu0 %1204
      %v1206 = vsel %vm1091, %v1169, 0.0
      %1207 = vadd.xlane.f32.xlu0 %v1206
      %v1208 = vpop.xlane.xlu0 %1207
      %v1209 = vsel %vm1091, %v1171, 0.0
      %1210 = vadd.xlane.f32.xlu0 %v1209
      %v1211 = vpop.xlane.xlu0 %1210
      %v1212 = vsel %vm1091, %v1173, 0.0
      %1213 = vadd.xlane.f32.xlu0 %v1212
      %v1214 = vpop.xlane.xlu0 %1213
      %v1215 = vsel %vm1091, %v1175, 0.0
      %1216 = vadd.xlane.f32.xlu0 %v1215
      %v1217 = vpop.xlane.xlu0 %1216
      %v1218 = vsel %vm1091, %v1177, 0.0
      %1219 = vadd.xlane.f32.xlu0 %v1218
      %v1220 = vpop.xlane.xlu0 %1219
      %v1221 = vsel %vm1091, %v1179, 0.0
      %1222 = vadd.xlane.f32.xlu0 %v1221
      %v1223 = vpop.xlane.xlu0 %1222
      %v1224 = vsel %vm1091, %v1181, 0.0
      %1225 = vadd.xlane.f32.xlu0 %v1224
      %v1226 = vpop.xlane.xlu0 %1225
      %v1227 = vsel %vm1091, %v1183, 0.0
      %1228 = vadd.xlane.f32.xlu0 %v1227
      %v1229 = vpop.xlane.xlu0 %1228
      %v1230 = vsel %vm1091, %v1185, 0.0
      %1231 = vadd.xlane.f32.xlu0 %v1230
      %v1232 = vpop.xlane.xlu0 %1231
      %v1233 = vsel %vm1091, %v1187, 0.0
      %1234 = vadd.xlane.f32.xlu0 %v1233
      %v1235 = vpop.xlane.xlu0 %1234
      %v1236 = vpack.c.bf16 %v1159, %v1157
      %v1237 = vpack.c.bf16 %v1163, %v1161
      %v1238 = vpack.c.bf16 %v1167, %v1165
      %v1239 = vpack.c.bf16 %v1171, %v1169
      %v1240 = vpack.c.bf16 %v1175, %v1173
      %v1241 = vpack.c.bf16 %v1179, %v1177
      %v1242 = vpack.c.bf16 %v1183, %v1181
      %v1243 = vpack.c.bf16 %v1187, %v1185
      %v1245 = vsel %vm1091, %v1236, 0
      %v1248 = vsel %vm1091, %v1237, 0
      %v1251 = vsel %vm1091, %v1238, 0
      %v1254 = vsel %vm1091, %v1239, 0
      %1256 = vmatprep.subr.bf16.mxu0 0
      %1257 = vmatpush1.bf16.msra.mxu0 0
      %1258 = vmatprep.subr.bf16.mxu0 0
      %1259 = vmatpush1.bf16.msra.mxu0 0
      %1260 = vmatprep.subr.bf16.mxu0 0
      %1261 = vmatpush1.bf16.msra.mxu0 0
      %1262 = vmatprep.subr.bf16.mxu0 0
      %1263 = vmatpush1.bf16.msra.mxu0 0
      %1264 = vmatprep.subr.bf16.mxu0 0
      %1265 = vmatpush1.bf16.msra.mxu0 %v908
      %1266 = vmatprep.subr.bf16.mxu0 0
      %1267 = vmatpush1.bf16.msra.mxu0 %v907
      %1268 = vmatprep.subr.bf16.mxu0 0
      %1269 = vmatpush1.bf16.msra.mxu0 %v906
      %1270 = vmatprep.subr.bf16.mxu0 0
      %1271 = vmatpush1.bf16.msra.mxu0 %v905
      %1272 = vmatprep.subr.bf16.mxu0 0
      %1273 = vmatpush2.bf16.msra.mxu0 0
      %1274 = vmatprep.subr.bf16.mxu0 0
      %1275 = vmatpush2.bf16.msra.mxu0 0
      %1276 = vmatprep.subr.bf16.mxu0 0
      %1277 = vmatpush2.bf16.msra.mxu0 0
      %1278 = vmatprep.subr.bf16.mxu0 0
      %1279 = vmatpush2.bf16.msra.mxu0 0
      %1280 = vmatprep.subr.bf16.mxu0 0
      %1281 = vmatpush2.bf16.msra.mxu0 0
      %1282 = vmatprep.subr.bf16.mxu0 0
      %1283 = vmatpush2.bf16.msra.mxu0 0
      %1284 = vmatprep.subr.bf16.mxu0 0
      %1285 = vmatpush2.bf16.msra.mxu0 0
      %1286 = vmatprep.subr.bf16.mxu0 0
      %1287 = vmatpush2.bf16.msra.mxu0 0
      %1288 = vmatprep.mubr.bf16.mxu0 0
      %1289 = vmatmul.mubr.bf16.gmra.mxu0 %v1245
      %v1290 = vpop.f32.mrf.mxu0
      %v1291 = vadd.f32 0.0, %v1290
      %v1292 = vpop.f32.mrf.mxu0
      %v1293 = vpop.f32.mrf.mxu0
      %v1294 = vadd.f32 0.0, %v1293
      %v1295 = vpop.f32.mrf.mxu0
      %1296 = vmatprep.mubr.bf16.mxu0 0
      %1297 = vmatmul.mubr.bf16.gmra.mxu0 %v1248
      %v1298 = vpop.f32.mrf.mxu0
      %v1299 = vadd.f32 0.0, %v1298
      %v1300 = vpop.f32.mrf.mxu0
      %v1301 = vpop.f32.mrf.mxu0
      %v1302 = vadd.f32 0.0, %v1301
      %v1303 = vpop.f32.mrf.mxu0
      %1304 = vmatprep.mubr.bf16.mxu0 0
      %1305 = vmatmul.mubr.bf16.gmra.mxu0 %v1251
      %v1306 = vpop.f32.mrf.mxu0
      %v1307 = vadd.f32 0.0, %v1306
      %v1308 = vpop.f32.mrf.mxu0
      %v1309 = vpop.f32.mrf.mxu0
      %v1310 = vadd.f32 0.0, %v1309
      %v1311 = vpop.f32.mrf.mxu0
      %1312 = vmatprep.mubr.bf16.mxu0 0
      %1313 = vmatmul.mubr.bf16.gmra.mxu0 %v1254
      %v1314 = vpop.f32.mrf.mxu0
      %v1315 = vadd.f32 0.0, %v1314
      %v1316 = vpop.f32.mrf.mxu0
      %v1317 = vpop.f32.mrf.mxu0
      %v1318 = vadd.f32 0.0, %v1317
      %v1319 = vpop.f32.mrf.mxu0
      %1320 = vdwg.mxu0
      %v1322 = vsel %vm1091, %v1240, 0
      %v1325 = vsel %vm1091, %v1241, 0
      %v1328 = vsel %vm1091, %v1242, 0
      %v1331 = vsel %vm1091, %v1243, 0
      %1333 = vmatprep.subr.bf16.mxu0 0
      %1334 = vmatpush1.bf16.msra.mxu0 0
      %1335 = vmatprep.subr.bf16.mxu0 0
      %1336 = vmatpush1.bf16.msra.mxu0 0
      %1337 = vmatprep.subr.bf16.mxu0 0
      %1338 = vmatpush1.bf16.msra.mxu0 0
      %1339 = vmatprep.subr.bf16.mxu0 0
      %1340 = vmatpush1.bf16.msra.mxu0 0
      %1341 = vmatprep.subr.bf16.mxu0 0
      %1342 = vmatpush1.bf16.msra.mxu0 %v912
      %1343 = vmatprep.subr.bf16.mxu0 0
      %1344 = vmatpush1.bf16.msra.mxu0 %v911
      %1345 = vmatprep.subr.bf16.mxu0 0
      %1346 = vmatpush1.bf16.msra.mxu0 %v910
      %1347 = vmatprep.subr.bf16.mxu0 0
      %1348 = vmatpush1.bf16.msra.mxu0 %v909
      %1349 = vmatprep.subr.bf16.mxu0 0
      %1350 = vmatpush2.bf16.msra.mxu0 0
      %1351 = vmatprep.subr.bf16.mxu0 0
      %1352 = vmatpush2.bf16.msra.mxu0 0
      %1353 = vmatprep.subr.bf16.mxu0 0
      %1354 = vmatpush2.bf16.msra.mxu0 0
      %1355 = vmatprep.subr.bf16.mxu0 0
      %1356 = vmatpush2.bf16.msra.mxu0 0
      %1357 = vmatprep.subr.bf16.mxu0 0
      %1358 = vmatpush2.bf16.msra.mxu0 0
      %1359 = vmatprep.subr.bf16.mxu0 0
      %1360 = vmatpush2.bf16.msra.mxu0 0
      %1361 = vmatprep.subr.bf16.mxu0 0
      %1362 = vmatpush2.bf16.msra.mxu0 0
      %1363 = vmatprep.subr.bf16.mxu0 0
      %1364 = vmatpush2.bf16.msra.mxu0 0
      %1365 = vmatprep.mubr.bf16.mxu0 0
      %1366 = vmatmul.mubr.bf16.gmra.mxu0 %v1322
      %v1367 = vpop.f32.mrf.mxu0
      %v1368 = vadd.f32 0.0, %v1367
      %v1369 = vpop.f32.mrf.mxu0
      %v1370 = vpop.f32.mrf.mxu0
      %v1371 = vadd.f32 0.0, %v1370
      %v1372 = vpop.f32.mrf.mxu0
      %1373 = vmatprep.mubr.bf16.mxu0 0
      %1374 = vmatmul.mubr.bf16.gmra.mxu0 %v1325
      %v1375 = vpop.f32.mrf.mxu0
      %v1376 = vadd.f32 0.0, %v1375
      %v1377 = vpop.f32.mrf.mxu0
      %v1378 = vpop.f32.mrf.mxu0
      %v1379 = vadd.f32 0.0, %v1378
      %v1380 = vpop.f32.mrf.mxu0
      %1381 = vmatprep.mubr.bf16.mxu0 0
      %1382 = vmatmul.mubr.bf16.gmra.mxu0 %v1328
      %v1383 = vpop.f32.mrf.mxu0
      %v1384 = vadd.f32 0.0, %v1383
      %v1385 = vpop.f32.mrf.mxu0
      %v1386 = vpop.f32.mrf.mxu0
      %v1387 = vadd.f32 0.0, %v1386
      %v1388 = vpop.f32.mrf.mxu0
      %1389 = vmatprep.mubr.bf16.mxu0 0
      %1390 = vmatmul.mubr.bf16.gmra.mxu0 %v1331
      %v1391 = vpop.f32.mrf.mxu0
      %v1392 = vadd.f32 0.0, %v1391
      %v1393 = vpop.f32.mrf.mxu0
      %v1394 = vpop.f32.mrf.mxu0
      %v1395 = vadd.f32 0.0, %v1394
      %v1396 = vpop.f32.mrf.mxu0
      %1397 = vdwg.mxu0
      %v1398 = vrcp.pop %v1190
      %v1399 = vrcp.pop %v1193
      %v1400 = vrcp.pop %v1196
      %v1401 = vrcp.pop %v1199
      %v1402 = vrcp.pop %v1202
      %v1403 = vrcp.pop %v1205
      %v1404 = vrcp.pop %v1208
      %v1405 = vrcp.pop %v1211
      %v1406 = vrcp.pop %v1214
      %v1407 = vrcp.pop %v1217
      %v1408 = vrcp.pop %v1220
      %v1409 = vrcp.pop %v1223
      %v1410 = vrcp.pop %v1226
      %v1411 = vrcp.pop %v1229
      %v1412 = vrcp.pop %v1232
      %v1413 = vrcp.pop %v1235
      %v1414 = vmul.f32 %v1291, %v1398
      %v1415 = vmul.f32 %v1294, %v1399
      %v1416 = vmul.f32 %v1299, %v1400
      %v1417 = vmul.f32 %v1302, %v1401
      %v1418 = vmul.f32 %v1307, %v1402
      %v1419 = vmul.f32 %v1310, %v1403
      %v1420 = vmul.f32 %v1315, %v1404
      %v1421 = vmul.f32 %v1318, %v1405
      %v1422 = vmul.f32 %v1368, %v1406
      %v1423 = vmul.f32 %v1371, %v1407
      %v1424 = vmul.f32 %v1376, %v1408
      %v1425 = vmul.f32 %v1379, %v1409
      %v1426 = vmul.f32 %v1384, %v1410
      %v1427 = vmul.f32 %v1387, %v1411
      %v1428 = vmul.f32 %v1392, %v1412
      %v1429 = vmul.f32 %v1395, %v1413
      %v1430 = vpack.c.bf16 %v1415, %v1414
      %v1431 = vpack.c.bf16 %v1417, %v1416
      %v1432 = vpack.c.bf16 %v1419, %v1418
      %v1433 = vpack.c.bf16 %v1421, %v1420
      %v1434 = vpack.c.bf16 %v1423, %v1422
      %v1435 = vpack.c.bf16 %v1425, %v1424
      %v1436 = vpack.c.bf16 %v1427, %v1426
      %v1437 = vpack.c.bf16 %v1429, %v1428
      %v1438 = vld [vmem:[%s8] sm:$0xf]
      %v1439 = vld [vmem:[%s8 + $0x4] sm:$0xf]
      %v1440 = vld [vmem:[%s9] sm:$0x1]
      %v1442 = vlaneseq
      %v1443 = vshrl.u32 %v1442, 7
      %v1444 = vsub.s32 0, %v1443
      %v1445 = vrot.slane %v1440, %v1444
      %v1449 = vunpack.c.l.b16 %v1438
      %v1450 = vunpack.c.l.b16 %v1439
      %v1451 = vpack.c.b16 %v1450, %v1449
      %v1454 = vsel %vm401, %v1430, 0
      %v1457 = vsel %vm401, %v1431, 0
      %v1460 = vsel %vm401, %v1432, 0
      %v1463 = vsel %vm401, %v1433, 0
      %v1466 = vsel %vm401, %v1434, 0
      %v1469 = vsel %vm401, %v1435, 0
      %v1472 = vsel %vm401, %v1436, 0
      %v1475 = vsel %vm401, %v1437, 0
      %1477 = vmatprep.subr.bf16.mxu0 0
      %1478 = vmatpush1.bf16.msra.mxu0 0
      %1479 = vmatprep.subr.bf16.mxu0 0
      %1480 = vmatpush1.bf16.msra.mxu0 0
      %1481 = vmatprep.subr.bf16.mxu0 0
      %1482 = vmatpush1.bf16.msra.mxu0 0
      %1483 = vmatprep.subr.bf16.mxu0 0
      %1484 = vmatpush1.bf16.msra.mxu0 0
      %1485 = vmatprep.subr.bf16.mxu0 0
      %1486 = vmatpush1.bf16.msra.mxu0 0
      %1487 = vmatprep.subr.bf16.mxu0 0
      %1488 = vmatpush1.bf16.msra.mxu0 0
      %1489 = vmatprep.subr.bf16.mxu0 0
      %1490 = vmatpush1.bf16.msra.mxu0 0
      %1491 = vmatprep.subr.bf16.mxu0 0
      %1492 = vmatpush1.bf16.msra.mxu0 %v1451
      %1493 = vmatprep.subr.bf16.mxu0 0
      %1494 = vmatpush2.bf16.msra.mxu0 0
      %1495 = vmatprep.subr.bf16.mxu0 0
      %1496 = vmatpush2.bf16.msra.mxu0 0
      %1497 = vmatprep.subr.bf16.mxu0 0
      %1498 = vmatpush2.bf16.msra.mxu0 0
      %1499 = vmatprep.subr.bf16.mxu0 0
      %1500 = vmatpush2.bf16.msra.mxu0 0
      %1501 = vmatprep.subr.bf16.mxu0 0
      %1502 = vmatpush2.bf16.msra.mxu0 0
      %1503 = vmatprep.subr.bf16.mxu0 0
      %1504 = vmatpush2.bf16.msra.mxu0 0
      %1505 = vmatprep.subr.bf16.mxu0 0
      %1506 = vmatpush2.bf16.msra.mxu0 0
      %1507 = vmatprep.subr.bf16.mxu0 0
      %1508 = vmatpush2.bf16.msra.mxu0 0
      %1509 = vmatprep.mubr.bf16.mxu0 0
      %1510 = vmatmul.mubr.bf16.gmra.mxu0 %v1454
      %v1511 = vpop.f32.mrf.mxu0
      %v1512 = vadd.f32 %v1445, %v1511
      %v1513 = vpop.f32.mrf.mxu0
      %v1514 = vpop.f32.mrf.mxu0
      %v1515 = vadd.f32 %v1445, %v1514
      %v1516 = vpop.f32.mrf.mxu0
      %1517 = vmatprep.mubr.bf16.mxu0 0
      %1518 = vmatmul.mubr.bf16.gmra.mxu0 %v1457
      %v1519 = vpop.f32.mrf.mxu0
      %v1520 = vadd.f32 %v1445, %v1519
      %v1521 = vpop.f32.mrf.mxu0
      %v1522 = vpop.f32.mrf.mxu0
      %v1523 = vadd.f32 %v1445, %v1522
      %v1524 = vpop.f32.mrf.mxu0
      %1525 = vmatprep.mubr.bf16.mxu0 0
      %1526 = vmatmul.mubr.bf16.gmra.mxu0 %v1460
      %v1527 = vpop.f32.mrf.mxu0
      %v1528 = vadd.f32 %v1445, %v1527
      %v1529 = vpop.f32.mrf.mxu0
      %v1530 = vpop.f32.mrf.mxu0
      %v1531 = vadd.f32 %v1445, %v1530
      %v1532 = vpop.f32.mrf.mxu0
      %1533 = vmatprep.mubr.bf16.mxu0 0
      %1534 = vmatmul.mubr.bf16.gmra.mxu0 %v1463
      %v1535 = vpop.f32.mrf.mxu0
      %v1536 = vadd.f32 %v1445, %v1535
      %v1537 = vpop.f32.mrf.mxu0
      %v1538 = vpop.f32.mrf.mxu0
      %v1539 = vadd.f32 %v1445, %v1538
      %v1540 = vpop.f32.mrf.mxu0
      %1541 = vmatprep.mubr.bf16.mxu0 0
      %1542 = vmatmul.mubr.bf16.gmra.mxu0 %v1466
      %v1543 = vpop.f32.mrf.mxu0
      %v1544 = vadd.f32 %v1445, %v1543
      %v1545 = vpop.f32.mrf.mxu0
      %v1546 = vpop.f32.mrf.mxu0
      %v1547 = vadd.f32 %v1445, %v1546
      %v1548 = vpop.f32.mrf.mxu0
      %1549 = vmatprep.mubr.bf16.mxu0 0
      %1550 = vmatmul.mubr.bf16.gmra.mxu0 %v1469
      %v1551 = vpop.f32.mrf.mxu0
      %v1552 = vadd.f32 %v1445, %v1551
      %v1553 = vpop.f32.mrf.mxu0
      %v1554 = vpop.f32.mrf.mxu0
      %v1555 = vadd.f32 %v1445, %v1554
      %v1556 = vpop.f32.mrf.mxu0
      %1557 = vmatprep.mubr.bf16.mxu0 0
      %1558 = vmatmul.mubr.bf16.gmra.mxu0 %v1472
      %v1559 = vpop.f32.mrf.mxu0
      %v1560 = vadd.f32 %v1445, %v1559
      %v1561 = vpop.f32.mrf.mxu0
      %v1562 = vpop.f32.mrf.mxu0
      %v1563 = vadd.f32 %v1445, %v1562
      %v1564 = vpop.f32.mrf.mxu0
      %1565 = vmatprep.mubr.bf16.mxu0 0
      %1566 = vmatmul.mubr.bf16.gmra.mxu0 %v1475
      %v1567 = vpop.f32.mrf.mxu0
      %v1568 = vadd.f32 %v1445, %v1567
      %v1569 = vpop.f32.mrf.mxu0
      %v1570 = vpop.f32.mrf.mxu0
      %v1571 = vadd.f32 %v1445, %v1570
      %v1572 = vpop.f32.mrf.mxu0
      %1573 = vdwg.mxu0
      %v1574 = vadd.f32 %v369, %v1512
      %v1575 = vadd.f32 %v370, %v1515
      %v1576 = vadd.f32 %v371, %v1520
      %v1577 = vadd.f32 %v372, %v1523
      %v1578 = vadd.f32 %v373, %v1528
      %v1579 = vadd.f32 %v374, %v1531
      %v1580 = vadd.f32 %v375, %v1536
      %v1581 = vadd.f32 %v376, %v1539
      %v1582 = vadd.f32 %v377, %v1544
      %v1583 = vadd.f32 %v378, %v1547
      %v1584 = vadd.f32 %v379, %v1552
      %v1585 = vadd.f32 %v380, %v1555
      %v1586 = vadd.f32 %v381, %v1560
      %v1587 = vadd.f32 %v382, %v1563
      %v1588 = vadd.f32 %v383, %v1568
      %v1589 = vadd.f32 %v384, %v1571
      %1590 = vst.msk [vmem:[%s366] sm:$0xff] %vm401, %v1574
      %1591 = vst.msk [vmem:[%s366 + $0x8] sm:$0xff] %vm401, %v1575
      %1592 = vst.msk [vmem:[%s366 + $0x10] sm:$0xff] %vm401, %v1576
      %1593 = vst.msk [vmem:[%s366 + $0x18] sm:$0xff] %vm401, %v1577
      %1594 = vst.msk [vmem:[%s366 + $0x20] sm:$0xff] %vm401, %v1578
      %1595 = vst.msk [vmem:[%s366 + $0x28] sm:$0xff] %vm401, %v1579
      %1596 = vst.msk [vmem:[%s366 + $0x30] sm:$0xff] %vm401, %v1580
      %1597 = vst.msk [vmem:[%s366 + $0x38] sm:$0xff] %vm401, %v1581
      %1598 = vst.msk [vmem:[%s366 + $0x40] sm:$0xff] %vm401, %v1582
      %1599 = vst.msk [vmem:[%s366 + $0x48] sm:$0xff] %vm401, %v1583
      %1600 = vst.msk [vmem:[%s366 + $0x50] sm:$0xff] %vm401, %v1584
      %1601 = vst.msk [vmem:[%s366 + $0x58] sm:$0xff] %vm401, %v1585
      %1602 = vst.msk [vmem:[%s366 + $0x60] sm:$0xff] %vm401, %v1586
      %1603 = vst.msk [vmem:[%s366 + $0x68] sm:$0xff] %vm401, %v1587
      %1604 = vst.msk [vmem:[%s366 + $0x70] sm:$0xff] %vm401, %v1588
      %1605 = vst.msk [vmem:[%s366 + $0x78] sm:$0xff] %vm401, %v1589
      %s1606 = smul.u32 2, %s21
      %p1607 = scmp.lt.s32.totalorder %s1606, 3
      %s1608 = scalar_select %p1607, %s1606, 3
      %s1609 = smul.addr %s1608, 8
      %s1610 = smul.addr %s1609, 8
      %s1611 = scalar_lea.vmem %s10, %s1610
      // Predicated region
      $region61: #{tpu_custom_call.1} parent=59 // pred_check
        %p1612 = pneg %p254
      $region62: #{tpu_custom_call.1} parent=59 // pred_check_branch
        %1614 = sbr.rel (%p1612) target = $region64
      $region63: #{tpu_custom_call.1} parent=59 // pred_region
        %s1615 = smul.u32 2, %s21
      $region64: #{tpu_custom_call.1} parent=59 // pred_fallthru
        _
    $region60: #{tpu_custom_call.1} parent=5 // pred_fallthru
      _
    %p1616 = scmp.le.s32.totalorder 2, %s16
    // Predicated region
    $region65: #{tpu_custom_call.1} parent=5 // pred_check
      %p1617 = pneg %p1616
    $region66: #{tpu_custom_call.1} parent=5 // pred_check_branch
      %1619 = sbr.rel (%p1617) target = $region68
    $region67: #{tpu_custom_call.1} parent=5 // pred_region
      %s1620 = ssub.s32 %s16, 2
      // Predicated region
      $region69: #{tpu_custom_call.1} parent=67 // pred_check
        %p1621 = pneg %p260
      $region70: #{tpu_custom_call.1} parent=67 // pred_check_branch
        %1623 = sbr.rel (%p1621) target = $region72
      $region71: #{tpu_custom_call.1} parent=67 // pred_region
        %s1624 = smul.u32 2, %s22
        %p1625 = scmp.lt.s32.totalorder %s1624, 3
        %s1626 = scalar_select %p1625, %s1624, 3
        %s1627 = smul.addr %s1626, 8
        %s1628 = smul.addr %s1627, 8
        %s1629 = scalar_lea.vmem %s10, %s1628
      $region72: #{tpu_custom_call.1} parent=67 // pred_fallthru
        _
    $region68: #{tpu_custom_call.1} parent=5 // pred_fallthru
      _
  $region6: #{tpu_custom_call.1} parent=0 // loop_footer
    %s20 = sadd.s32 1, %s16
  $region7: #{tpu_custom_call.1} parent=0 // loop_footer_branch
    %15 = sbr.rel target = $region3
  $region8: #{tpu_custom_call.1} parent=0 // loop_exit
    _

</llo_original>
